<compile_context>
chip_gen: v6e
topology: v6e:2x2x1
jax: 0.10.0
libtpu: 0.0.40
codegen_flags: <defaults>
</compile_context>

<pallas_src>
import jax
import jax.numpy as jnp
import numpy as np
from jax import lax
from jax.experimental import pallas as pl
from jax.experimental.pallas import tpu as pltpu


# ----------------------------------------------------------------------------
# Pallas kernel: init LSTM step + T decode steps + fc head, all in one call.
# ----------------------------------------------------------------------------
def decoder_rnn_kernel(
    init_in_ref,    # (B, H)   f32  BN(init(encoder_out)), precomputed in wrapper
    dec_len_ref,    # (B, 1)   i32  decode lengths (sorted descending)
    emb_ref,        # (T, B, E) bf16 time-major embeddings
    w_ih_ref,       # (E, 4H)  bf16 LSTMCell input weights (transposed)
    w_hh_ref,       # (H, 4H)  bf16 LSTMCell hidden weights (transposed)
    bias_ref,       # (1, 4H)  f32  b_ih + b_hh (pre-summed)
    w_fc_ref,       # (H, V)   bf16 output head weight (transposed)
    b_fc_ref,       # (1, V)   f32
    pred_ref,       # (T, B, V) f32 output
):
    H = w_hh_ref.shape[0]
    T = emb_ref.shape[0]

    w_ih = w_ih_ref[...]
    w_hh = w_hh_ref[...]
    bias = bias_ref[...]
    w_fc = w_fc_ref[...]
    b_fc = b_fc_ref[...]
    dec_len = dec_len_ref[...]                     # (B, 1) int32

    def lstm_step(x_bf16, h, c):
        # PyTorch LSTMCell gate order: input, forget, cell(g), output.
        gates = (
            jnp.dot(x_bf16, w_ih, preferred_element_type=jnp.float32)
            + jnp.dot(h.astype(jnp.bfloat16), w_hh,
                      preferred_element_type=jnp.float32)
            + bias
        )
        i = jax.nn.sigmoid(gates[:, 0 * H:1 * H])
        f = jax.nn.sigmoid(gates[:, 1 * H:2 * H])
        g = jnp.tanh(gates[:, 2 * H:3 * H])
        o = jax.nn.sigmoid(gates[:, 3 * H:4 * H])
        c_new = f * c + i * g
        h_new = o * jnp.tanh(c_new)
        return h_new, c_new

    # (h0, c0) = LSTMCell(init_input) with zero initial state.
    zeros = jnp.zeros(init_in_ref.shape, dtype=jnp.float32)
    h0, c0 = lstm_step(init_in_ref[...].astype(jnp.bfloat16), zeros, zeros)

    def body(t, carry):
        h, c = carry
        x_t = emb_ref[t]                           # (B, E) bf16
        h, c = lstm_step(x_t, h, c)
        # Dropout is identity in eval mode.
        preds = (
            jnp.dot(h.astype(jnp.bfloat16), w_fc,
                    preferred_element_type=jnp.float32)
            + b_fc
        )                                          # (B, V), lane-dense
        # Rows whose decode_length <= t keep the zero-init of `predictions`.
        mask = (dec_len > t).astype(jnp.float32)   # (B, 1)
        pred_ref[t] = preds * mask
        return (h, c)

    # Short static trip-count: fully unroll for LLO scheduler visibility.
    lax.fori_loop(0, T, body, (h0, c0), unroll=True)


# ----------------------------------------------------------------------------
# Wrapper (glue: flatten, sort, embedding gather, BN/bias folding, transposes)
# ----------------------------------------------------------------------------
def decoder_with_rnn_forward(params, encoder_out, encoded_captions, caption_lengths):
    B = encoder_out.shape[0]
    enc_flat = encoder_out.reshape(B, -1).astype(jnp.float32)   # (B, ENC)
    H = params["w_hh"].shape[1]
    E = params["w_ih"].shape[1]
    V = params["w_fc"].shape[0]
    # Static decode horizon (no host sync / per-length recompile). Equals
    # max(decode_lengths) whenever at least one caption uses the full length.
    T = encoded_captions.shape[1] - 1

    # sort by caption length, descending (stable; ties behave like torch.sort
    # only up to tie order — the test uses distinct lengths).
    cap_len = caption_lengths[:, 0]
    sort_ind = jnp.argsort(-cap_len)
    cap_len_sorted = cap_len[sort_ind]
    enc_sorted = enc_flat[sort_ind]
    caps_sorted = encoded_captions[sort_ind]
    decode_lengths = (cap_len_sorted - 1).astype(jnp.int32)

    # embedding lookup (gather) — JAX glue; cast to bf16 for the MXU path.
    embeddings = params["emb_table"][caps_sorted]               # (B, Tcap, E)
    emb_t = jnp.transpose(embeddings[:, :T, :], (1, 0, 2)).astype(jnp.bfloat16)

    # Hoisted one-shot init: eval-mode BatchNorm1d folded into the init Linear,
    # computed as a single XLA matmul — keeps (ENC, H) and (B, ENC) out of VMEM.
    eps = 1e-5
    bn_scale = params["bn_gamma"] / jnp.sqrt(params["bn_var"] + eps)
    bn_shift = params["bn_beta"] - params["bn_mean"] * bn_scale
    w_init_fold = params["w_init"].T * bn_scale[None, :]        # (ENC, H)
    b_init_fold = params["b_init"] * bn_scale + bn_shift        # (H,)
    init_in = enc_sorted @ w_init_fold + b_init_fold[None, :]   # (B, H) f32

    # Pre-sum the two LSTMCell biases.
    bias = (params["b_ih"] + params["b_hh"])[None, :].astype(jnp.float32)

    grid_spec = pltpu.PrefetchScalarGridSpec(
        num_scalar_prefetch=0,
        grid=(1,),
        in_specs=[
            pl.BlockSpec((B, H), lambda i: (0, 0)),             # init_in
            pl.BlockSpec((B, 1), lambda i: (0, 0)),             # decode_lengths
            pl.BlockSpec((T, B, E), lambda i: (0, 0, 0)),       # embeddings
            pl.BlockSpec((E, 4 * H), lambda i: (0, 0)),         # w_ih
            pl.BlockSpec((H, 4 * H), lambda i: (0, 0)),         # w_hh
            pl.BlockSpec((1, 4 * H), lambda i: (0, 0)),         # bias
            pl.BlockSpec((H, V), lambda i: (0, 0)),             # w_fc
            pl.BlockSpec((1, V), lambda i: (0, 0)),             # b_fc
        ],
        out_specs=pl.BlockSpec((T, B, V), lambda i: (0, 0, 0)),
    )

    preds_tbv = pl.pallas_call(
        decoder_rnn_kernel,
        out_shape=jax.ShapeDtypeStruct((T, B, V), jnp.float32),
        grid_spec=grid_spec,
        compiler_params=pltpu.CompilerParams(
            dimension_semantics=("arbitrary",),
        ),
    )(
        init_in.astype(jnp.float32),
        decode_lengths[:, None],
        emb_t,
        params["w_ih"].T.astype(jnp.bfloat16),
        params["w_hh"].T.astype(jnp.bfloat16),
        bias,
        params["w_fc"].T.astype(jnp.bfloat16),
        params["b_fc"][None, :].astype(jnp.float32),
    )

    predictions = jnp.transpose(preds_tbv, (1, 0, 2))           # (B, T, V)
    return predictions, caps_sorted, decode_lengths, sort_ind


# ----------------------------------------------------------------------------
# Pure-JAX reference (mirrors the PyTorch forward in eval mode, f32 throughout)
# ----------------------------------------------------------------------------
def reference_forward(params, encoder_out, encoded_captions, caption_lengths):
    B = encoder_out.shape[0]
    H = params["w_hh"].shape[1]
    enc = encoder_out.reshape(B, -1)
    cap_len = caption_lengths[:, 0]
    sort_ind = jnp.argsort(-cap_len)
    cap_len_sorted = cap_len[sort_ind]
    enc = enc[sort_ind]
    caps = encoded_captions[sort_ind]
    emb = params["emb_table"][caps]
    dec_len = cap_len_sorted - 1
    t_max = int(jnp.max(dec_len))

    eps = 1e-5
    init_lin = enc @ params["w_init"].T + params["b_init"]
    init_in = (init_lin - params["bn_mean"]) / jnp.sqrt(params["bn_var"] + eps)
    init_in = init_in * params["bn_gamma"] + params["bn_beta"]

    def lstm(x, h, c):
        gates = (x @ params["w_ih"].T + params["b_ih"]
                 + h @ params["w_hh"].T + params["b_hh"])
        i = jax.nn.sigmoid(gates[:, :H])
        f = jax.nn.sigmoid(gates[:, H:2 * H])
        g = jnp.tanh(gates[:, 2 * H:3 * H])
        o = jax.nn.sigmoid(gates[:, 3 * H:])
        c_new = f * c + i * g
        return o * jnp.tanh(c_new), c_new

    h, c = lstm(init_in, jnp.zeros((B, H), jnp.float32), jnp.zeros((B, H), jnp.float32))
    preds = []
    for t in range(t_max):
        h, c = lstm(emb[:, t, :], h, c)
        p = h @ params["w_fc"].T + params["b_fc"]
        preds.append(jnp.where((dec_len > t)[:, None], p, 0.0))
    return jnp.stack(preds, axis=1), caps, dec_len, sort_ind


# ----------------------------------------------------------------------------
# Deterministic parameter construction (shapes from the module's __init__)
# ----------------------------------------------------------------------------
def make_params(key, vocab_size, embed_dim, decoder_dim, encoder_dim):
    ks = jax.random.split(key, 8)
    H, E, V, ENC = decoder_dim, embed_dim, vocab_size, encoder_dim
    u = lambda k, shape, a: jax.random.uniform(k, shape, jnp.float32, -a, a)
    lstm_a = 1.0 / np.sqrt(H)
    init_a = 1.0 / np.sqrt(ENC)
    return {
        "emb_table": u(ks[0], (V, E), 0.1),                 # embedding.weight ~ U(-0.1, 0.1)
        "w_init": u(ks[1], (H, ENC), init_a),               # init Linear
        "b_init": u(ks[2], (H,), init_a),
        "bn_gamma": jnp.ones((H,), jnp.float32),            # BatchNorm1d defaults
        "bn_beta": jnp.zeros((H,), jnp.float32),
        "bn_mean": jnp.zeros((H,), jnp.float32),
        "bn_var": jnp.ones((H,), jnp.float32),
        "w_ih": u(ks[3], (4 * H, E), lstm_a),               # LSTMCell
        "w_hh": u(ks[4], (4 * H, H), lstm_a),
        "b_ih": u(ks[5], (4 * H,), lstm_a),
        "b_hh": u(ks[6], (4 * H,), lstm_a),
        "w_fc": u(ks[7], (V, H), 0.1),                      # fc.weight ~ U(-0.1, 0.1)
        "b_fc": jnp.zeros((V,), jnp.float32),               # fc.bias = 0
    }


if __name__ == "__main__":
    # Small config consistent with the module (embed_dim must equal decoder_dim).
    B = 4
    ENC_SIZE, ENC_CH = 2, 8               # encoder_out: (B, 2, 2, 8) -> encoder_dim = 32
    ENCODER_DIM = ENC_SIZE * ENC_SIZE * ENC_CH
    EMBED_DIM = DECODER_DIM = 32
    VOCAB = 128
    T_CAP = 8

    key = jax.random.PRNGKey(0)
    k_p, k_enc, k_cap = jax.random.split(key, 3)

    params = make_params(k_p, VOCAB, EMBED_DIM, DECODER_DIM, ENCODER_DIM)

    encoder_out = jax.random.normal(k_enc, (B, ENC_SIZE, ENC_SIZE, ENC_CH), jnp.float32)
    encoded_captions = jax.random.randint(k_cap, (B, T_CAP), 0, VOCAB, jnp.int32)
    # Distinct lengths; max length == T_CAP so the static horizon T_CAP-1 equals
    # the module's max(decode_lengths).
    caption_lengths = jnp.array([[5], [8], [3], [7]], dtype=jnp.int32)

    preds, caps_sorted, dec_len, sort_ind = decoder_with_rnn_forward(
        params, encoder_out, encoded_captions, caption_lengths)
    jax.block_until_ready(preds)

    ref_preds, ref_caps, ref_dec_len, ref_sort = reference_forward(
        params, encoder_out, encoded_captions, caption_lengths)

    np.testing.assert_allclose(np.asarray(preds), np.asarray(ref_preds),
                               rtol=2e-2, atol=2e-2)
    np.testing.assert_array_equal(np.asarray(caps_sorted), np.asarray(ref_caps))
    np.testing.assert_array_equal(np.asarray(sort_ind), np.asarray(ref_sort))

    print("KERNEL_OK")
</pallas_src>

<mosaic_0001>
module attributes {stable_mosaic.version = 11 : i64} {
  func.func @decoder_rnn_kernel(%arg0: i32, %arg1: memref<4x32xf32, #tpu.memory_space<vmem>>, %arg2: memref<4x1xi32, #tpu.memory_space<vmem>>, %arg3: memref<7x4x32xbf16, #tpu.memory_space<vmem>>, %arg4: memref<32x128xbf16, #tpu.memory_space<vmem>>, %arg5: memref<32x128xbf16, #tpu.memory_space<vmem>>, %arg6: memref<1x128xf32, #tpu.memory_space<vmem>>, %arg7: memref<32x128xbf16, #tpu.memory_space<vmem>>, %arg8: memref<1x128xf32, #tpu.memory_space<vmem>>, %arg9: memref<7x4x128xf32, #tpu.memory_space<vmem>>) attributes {dimension_semantics = [#tpu.dimension_semantics<arbitrary>], iteration_bounds = array<i64: 1>, scalar_prefetch = 0 : i64, scratch_operands = 0 : i64, tpu.core_type = #tpu.core_type<tc>, window_params = [{pipeline_mode = #tpu.pipeline_mode<synchronous>, transform_indices = @transform_0, window_bounds = array<i64: 4, 32>}, {pipeline_mode = #tpu.pipeline_mode<synchronous>, transform_indices = @transform_1, window_bounds = array<i64: 4, 1>}, {pipeline_mode = #tpu.pipeline_mode<synchronous>, transform_indices = @transform_2, window_bounds = array<i64: 7, 4, 32>}, {pipeline_mode = #tpu.pipeline_mode<synchronous>, transform_indices = @transform_3, window_bounds = array<i64: 32, 128>}, {pipeline_mode = #tpu.pipeline_mode<synchronous>, transform_indices = @transform_4, window_bounds = array<i64: 32, 128>}, {pipeline_mode = #tpu.pipeline_mode<synchronous>, transform_indices = @transform_5, window_bounds = array<i64: 1, 128>}, {pipeline_mode = #tpu.pipeline_mode<synchronous>, transform_indices = @transform_6, window_bounds = array<i64: 32, 128>}, {pipeline_mode = #tpu.pipeline_mode<synchronous>, transform_indices = @transform_7, window_bounds = array<i64: 1, 128>}, {pipeline_mode = #tpu.pipeline_mode<synchronous>, transform_indices = @transform_8, window_bounds = array<i64: 7, 4, 128>}]} {
    %c0 = arith.constant 0 : index
    %c0_0 = arith.constant 0 : index
    %0 = vector.load %arg4[%c0, %c0_0] : memref<32x128xbf16, #tpu.memory_space<vmem>>, vector<32x128xbf16>
    %c0_1 = arith.constant 0 : index
    %c0_2 = arith.constant 0 : index
    %1 = vector.load %arg5[%c0_1, %c0_2] : memref<32x128xbf16, #tpu.memory_space<vmem>>, vector<32x128xbf16>
    %c0_3 = arith.constant 0 : index
    %c0_4 = arith.constant 0 : index
    %2 = vector.load %arg6[%c0_3, %c0_4] : memref<1x128xf32, #tpu.memory_space<vmem>>, vector<1x128xf32>
    %c0_5 = arith.constant 0 : index
    %c0_6 = arith.constant 0 : index
    %3 = vector.load %arg7[%c0_5, %c0_6] : memref<32x128xbf16, #tpu.memory_space<vmem>>, vector<32x128xbf16>
    %c0_7 = arith.constant 0 : index
    %c0_8 = arith.constant 0 : index
    %4 = vector.load %arg8[%c0_7, %c0_8] : memref<1x128xf32, #tpu.memory_space<vmem>>, vector<1x128xf32>
    %c0_9 = arith.constant 0 : index
    %c0_10 = arith.constant 0 : index
    %5 = vector.load %arg2[%c0_9, %c0_10] : memref<4x1xi32, #tpu.memory_space<vmem>>, vector<4x1xi32>
    %cst = arith.constant 0.000000e+00 : f32
    %6 = vector.broadcast %cst : f32 to vector<4x32xf32>
    %c0_11 = arith.constant 0 : index
    %c0_12 = arith.constant 0 : index
    %7 = vector.load %arg1[%c0_11, %c0_12] : memref<4x32xf32, #tpu.memory_space<vmem>>, vector<4x32xf32>
    %8 = arith.truncf %7 : vector<4x32xf32> to vector<4x32xbf16>
    %cst_13 = arith.constant dense<0.000000e+00> : vector<4x128xf32>
    %9 = tpu.matmul %8, %0, %cst_13 {dimension_numbers = #tpu.dot_dimension_numbers<[1], [0], [0], [1], [0, 0, 1, 1], [], []>} : vector<4x32xbf16>, vector<32x128xbf16>, vector<4x128xf32> -> vector<4x128xf32>
    %10 = arith.truncf %6 : vector<4x32xf32> to vector<4x32xbf16>
    %cst_14 = arith.constant dense<0.000000e+00> : vector<4x128xf32>
    %11 = tpu.matmul %10, %1, %cst_14 {dimension_numbers = #tpu.dot_dimension_numbers<[1], [0], [0], [1], [0, 0, 1, 1], [], []>} : vector<4x32xbf16>, vector<32x128xbf16>, vector<4x128xf32> -> vector<4x128xf32>
    %12 = arith.addf %9, %11 : vector<4x128xf32>
    %13 = vector.broadcast %2 : vector<1x128xf32> to vector<4x128xf32>
    %14 = arith.addf %12, %13 : vector<4x128xf32>
    %15 = vector.extract_strided_slice %14 {offsets = [0, 0], sizes = [4, 32], strides = [1, 1]} : vector<4x128xf32> to vector<4x32xf32>
    %16 = arith.negf %15 : vector<4x32xf32>
    %17 = math.exp %16 : vector<4x32xf32>
    %cst_15 = arith.constant 1.000000e+00 : f32
    %18 = vector.broadcast %cst_15 : f32 to vector<4x32xf32>
    %19 = arith.addf %18, %17 : vector<4x32xf32>
    %20 = arith.divf %18, %19 : vector<4x32xf32>
    %21 = vector.extract_strided_slice %14 {offsets = [0, 32], sizes = [4, 32], strides = [1, 1]} : vector<4x128xf32> to vector<4x32xf32>
    %22 = arith.negf %21 : vector<4x32xf32>
    %23 = math.exp %22 : vector<4x32xf32>
    %cst_16 = arith.constant 1.000000e+00 : f32
    %24 = vector.broadcast %cst_16 : f32 to vector<4x32xf32>
    %25 = arith.addf %24, %23 : vector<4x32xf32>
    %26 = arith.divf %24, %25 : vector<4x32xf32>
    %27 = vector.extract_strided_slice %14 {offsets = [0, 64], sizes = [4, 32], strides = [1, 1]} : vector<4x128xf32> to vector<4x32xf32>
    %28 = math.tanh %27 : vector<4x32xf32>
    %29 = vector.extract_strided_slice %14 {offsets = [0, 96], sizes = [4, 32], strides = [1, 1]} : vector<4x128xf32> to vector<4x32xf32>
    %30 = arith.negf %29 : vector<4x32xf32>
    %31 = math.exp %30 : vector<4x32xf32>
    %cst_17 = arith.constant 1.000000e+00 : f32
    %32 = vector.broadcast %cst_17 : f32 to vector<4x32xf32>
    %33 = arith.addf %32, %31 : vector<4x32xf32>
    %34 = arith.divf %32, %33 : vector<4x32xf32>
    %35 = arith.mulf %26, %6 : vector<4x32xf32>
    %36 = arith.mulf %20, %28 : vector<4x32xf32>
    %37 = arith.addf %35, %36 : vector<4x32xf32>
    %38 = math.tanh %37 : vector<4x32xf32>
    %39 = arith.mulf %34, %38 : vector<4x32xf32>
    %c0_i32 = arith.constant 0 : i32
    %40 = arith.index_cast %c0_i32 : i32 to index
    %c0_18 = arith.constant 0 : index
    %c0_19 = arith.constant 0 : index
    %41 = vector.load %arg3[%40, %c0_18, %c0_19] : memref<7x4x32xbf16, #tpu.memory_space<vmem>>, vector<1x4x32xbf16>
    %42 = vector.shape_cast %41 : vector<1x4x32xbf16> to vector<4x32xbf16>
    %cst_20 = arith.constant dense<0.000000e+00> : vector<4x128xf32>
    %43 = tpu.matmul %42, %0, %cst_20 {dimension_numbers = #tpu.dot_dimension_numbers<[1], [0], [0], [1], [0, 0, 1, 1], [], []>} : vector<4x32xbf16>, vector<32x128xbf16>, vector<4x128xf32> -> vector<4x128xf32>
    %44 = arith.truncf %39 : vector<4x32xf32> to vector<4x32xbf16>
    %cst_21 = arith.constant dense<0.000000e+00> : vector<4x128xf32>
    %45 = tpu.matmul %44, %1, %cst_21 {dimension_numbers = #tpu.dot_dimension_numbers<[1], [0], [0], [1], [0, 0, 1, 1], [], []>} : vector<4x32xbf16>, vector<32x128xbf16>, vector<4x128xf32> -> vector<4x128xf32>
    %46 = arith.addf %43, %45 : vector<4x128xf32>
    %47 = vector.broadcast %2 : vector<1x128xf32> to vector<4x128xf32>
    %48 = arith.addf %46, %47 : vector<4x128xf32>
    %49 = vector.extract_strided_slice %48 {offsets = [0, 0], sizes = [4, 32], strides = [1, 1]} : vector<4x128xf32> to vector<4x32xf32>
    %50 = arith.negf %49 : vector<4x32xf32>
    %51 = math.exp %50 : vector<4x32xf32>
    %cst_22 = arith.constant 1.000000e+00 : f32
    %52 = vector.broadcast %cst_22 : f32 to vector<4x32xf32>
    %53 = arith.addf %52, %51 : vector<4x32xf32>
    %54 = arith.divf %52, %53 : vector<4x32xf32>
    %55 = vector.extract_strided_slice %48 {offsets = [0, 32], sizes = [4, 32], strides = [1, 1]} : vector<4x128xf32> to vector<4x32xf32>
    %56 = arith.negf %55 : vector<4x32xf32>
    %57 = math.exp %56 : vector<4x32xf32>
    %cst_23 = arith.constant 1.000000e+00 : f32
    %58 = vector.broadcast %cst_23 : f32 to vector<4x32xf32>
    %59 = arith.addf %58, %57 : vector<4x32xf32>
    %60 = arith.divf %58, %59 : vector<4x32xf32>
    %61 = vector.extract_strided_slice %48 {offsets = [0, 64], sizes = [4, 32], strides = [1, 1]} : vector<4x128xf32> to vector<4x32xf32>
    %62 = math.tanh %61 : vector<4x32xf32>
    %63 = vector.extract_strided_slice %48 {offsets = [0, 96], sizes = [4, 32], strides = [1, 1]} : vector<4x128xf32> to vector<4x32xf32>
    %64 = arith.negf %63 : vector<4x32xf32>
    %65 = math.exp %64 : vector<4x32xf32>
    %cst_24 = arith.constant 1.000000e+00 : f32
    %66 = vector.broadcast %cst_24 : f32 to vector<4x32xf32>
    %67 = arith.addf %66, %65 : vector<4x32xf32>
    %68 = arith.divf %66, %67 : vector<4x32xf32>
    %69 = arith.mulf %60, %37 : vector<4x32xf32>
    %70 = arith.mulf %54, %62 : vector<4x32xf32>
    %71 = arith.addf %69, %70 : vector<4x32xf32>
    %72 = math.tanh %71 : vector<4x32xf32>
    %73 = arith.mulf %68, %72 : vector<4x32xf32>
    %74 = arith.truncf %73 : vector<4x32xf32> to vector<4x32xbf16>
    %cst_25 = arith.constant dense<0.000000e+00> : vector<4x128xf32>
    %75 = tpu.matmul %74, %3, %cst_25 {dimension_numbers = #tpu.dot_dimension_numbers<[1], [0], [0], [1], [0, 0, 1, 1], [], []>} : vector<4x32xbf16>, vector<32x128xbf16>, vector<4x128xf32> -> vector<4x128xf32>
    %76 = vector.broadcast %4 : vector<1x128xf32> to vector<4x128xf32>
    %77 = arith.addf %75, %76 : vector<4x128xf32>
    %78 = vector.broadcast %c0_i32 : i32 to vector<4x1xi32>
    %79 = arith.cmpi sgt, %5, %78 : vector<4x1xi32>
    %80 = arith.extui %79 : vector<4x1xi1> to vector<4x1xi32>
    %81 = arith.sitofp %80 : vector<4x1xi32> to vector<4x1xf32>
    %82 = vector.broadcast %81 : vector<4x1xf32> to vector<4x128xf32>
    %83 = arith.mulf %77, %82 : vector<4x128xf32>
    %84 = arith.index_cast %c0_i32 : i32 to index
    %c0_26 = arith.constant 0 : index
    %c0_27 = arith.constant 0 : index
    %85 = vector.load %arg9[%84, %c0_26, %c0_27] : memref<7x4x128xf32, #tpu.memory_space<vmem>>, vector<1x4x128xf32>
    %86 = vector.shape_cast %85 : vector<1x4x128xf32> to vector<4x128xf32>
    %87 = vector.shape_cast %83 : vector<4x128xf32> to vector<1x4x128xf32>
    tpu.vector_store %arg9[%84, %c0_26, %c0_27], %87 {strides = array<i32>} : memref<7x4x128xf32, #tpu.memory_space<vmem>>, vector<1x4x128xf32>,
    %c1_i32 = arith.constant 1 : i32
    %88 = arith.index_cast %c1_i32 : i32 to index
    %c0_28 = arith.constant 0 : index
    %c0_29 = arith.constant 0 : index
    %89 = vector.load %arg3[%88, %c0_28, %c0_29] : memref<7x4x32xbf16, #tpu.memory_space<vmem>>, vector<1x4x32xbf16>
    %90 = vector.shape_cast %89 : vector<1x4x32xbf16> to vector<4x32xbf16>
    %cst_30 = arith.constant dense<0.000000e+00> : vector<4x128xf32>
    %91 = tpu.matmul %90, %0, %cst_30 {dimension_numbers = #tpu.dot_dimension_numbers<[1], [0], [0], [1], [0, 0, 1, 1], [], []>} : vector<4x32xbf16>, vector<32x128xbf16>, vector<4x128xf32> -> vector<4x128xf32>
    %92 = arith.truncf %73 : vector<4x32xf32> to vector<4x32xbf16>
    %cst_31 = arith.constant dense<0.000000e+00> : vector<4x128xf32>
    %93 = tpu.matmul %92, %1, %cst_31 {dimension_numbers = #tpu.dot_dimension_numbers<[1], [0], [0], [1], [0, 0, 1, 1], [], []>} : vector<4x32xbf16>, vector<32x128xbf16>, vector<4x128xf32> -> vector<4x128xf32>
    %94 = arith.addf %91, %93 : vector<4x128xf32>
    %95 = vector.broadcast %2 : vector<1x128xf32> to vector<4x128xf32>
    %96 = arith.addf %94, %95 : vector<4x128xf32>
    %97 = vector.extract_strided_slice %96 {offsets = [0, 0], sizes = [4, 32], strides = [1, 1]} : vector<4x128xf32> to vector<4x32xf32>
    %98 = arith.negf %97 : vector<4x32xf32>
    %99 = math.exp %98 : vector<4x32xf32>
    %cst_32 = arith.constant 1.000000e+00 : f32
    %100 = vector.broadcast %cst_32 : f32 to vector<4x32xf32>
    %101 = arith.addf %100, %99 : vector<4x32xf32>
    %102 = arith.divf %100, %101 : vector<4x32xf32>
    %103 = vector.extract_strided_slice %96 {offsets = [0, 32], sizes = [4, 32], strides = [1, 1]} : vector<4x128xf32> to vector<4x32xf32>
    %104 = arith.negf %103 : vector<4x32xf32>
    %105 = math.exp %104 : vector<4x32xf32>
    %cst_33 = arith.constant 1.000000e+00 : f32
    %106 = vector.broadcast %cst_33 : f32 to vector<4x32xf32>
    %107 = arith.addf %106, %105 : vector<4x32xf32>
    %108 = arith.divf %106, %107 : vector<4x32xf32>
    %109 = vector.extract_strided_slice %96 {offsets = [0, 64], sizes = [4, 32], strides = [1, 1]} : vector<4x128xf32> to vector<4x32xf32>
    %110 = math.tanh %109 : vector<4x32xf32>
    %111 = vector.extract_strided_slice %96 {offsets = [0, 96], sizes = [4, 32], strides = [1, 1]} : vector<4x128xf32> to vector<4x32xf32>
    %112 = arith.negf %111 : vector<4x32xf32>
    %113 = math.exp %112 : vector<4x32xf32>
    %cst_34 = arith.constant 1.000000e+00 : f32
    %114 = vector.broadcast %cst_34 : f32 to vector<4x32xf32>
    %115 = arith.addf %114, %113 : vector<4x32xf32>
    %116 = arith.divf %114, %115 : vector<4x32xf32>
    %117 = arith.mulf %108, %71 : vector<4x32xf32>
    %118 = arith.mulf %102, %110 : vector<4x32xf32>
    %119 = arith.addf %117, %118 : vector<4x32xf32>
    %120 = math.tanh %119 : vector<4x32xf32>
    %121 = arith.mulf %116, %120 : vector<4x32xf32>
    %122 = arith.truncf %121 : vector<4x32xf32> to vector<4x32xbf16>
    %cst_35 = arith.constant dense<0.000000e+00> : vector<4x128xf32>
    %123 = tpu.matmul %122, %3, %cst_35 {dimension_numbers = #tpu.dot_dimension_numbers<[1], [0], [0], [1], [0, 0, 1, 1], [], []>} : vector<4x32xbf16>, vector<32x128xbf16>, vector<4x128xf32> -> vector<4x128xf32>
    %124 = vector.broadcast %4 : vector<1x128xf32> to vector<4x128xf32>
    %125 = arith.addf %123, %124 : vector<4x128xf32>
    %126 = vector.broadcast %c1_i32 : i32 to vector<4x1xi32>
    %127 = arith.cmpi sgt, %5, %126 : vector<4x1xi32>
    %128 = arith.extui %127 : vector<4x1xi1> to vector<4x1xi32>
    %129 = arith.sitofp %128 : vector<4x1xi32> to vector<4x1xf32>
    %130 = vector.broadcast %129 : vector<4x1xf32> to vector<4x128xf32>
    %131 = arith.mulf %125, %130 : vector<4x128xf32>
    %132 = arith.index_cast %c1_i32 : i32 to index
    %c0_36 = arith.constant 0 : index
    %c0_37 = arith.constant 0 : index
    %133 = vector.load %arg9[%132, %c0_36, %c0_37] : memref<7x4x128xf32, #tpu.memory_space<vmem>>, vector<1x4x128xf32>
    %134 = vector.shape_cast %133 : vector<1x4x128xf32> to vector<4x128xf32>
    %135 = vector.shape_cast %131 : vector<4x128xf32> to vector<1x4x128xf32>
    tpu.vector_store %arg9[%132, %c0_36, %c0_37], %135 {strides = array<i32>} : memref<7x4x128xf32, #tpu.memory_space<vmem>>, vector<1x4x128xf32>,
    %c2_i32 = arith.constant 2 : i32
    %136 = arith.index_cast %c2_i32 : i32 to index
    %c0_38 = arith.constant 0 : index
    %c0_39 = arith.constant 0 : index
    %137 = vector.load %arg3[%136, %c0_38, %c0_39] : memref<7x4x32xbf16, #tpu.memory_space<vmem>>, vector<1x4x32xbf16>
    %138 = vector.shape_cast %137 : vector<1x4x32xbf16> to vector<4x32xbf16>
    %cst_40 = arith.constant dense<0.000000e+00> : vector<4x128xf32>
    %139 = tpu.matmul %138, %0, %cst_40 {dimension_numbers = #tpu.dot_dimension_numbers<[1], [0], [0], [1], [0, 0, 1, 1], [], []>} : vector<4x32xbf16>, vector<32x128xbf16>, vector<4x128xf32> -> vector<4x128xf32>
    %140 = arith.truncf %121 : vector<4x32xf32> to vector<4x32xbf16>
    %cst_41 = arith.constant dense<0.000000e+00> : vector<4x128xf32>
    %141 = tpu.matmul %140, %1, %cst_41 {dimension_numbers = #tpu.dot_dimension_numbers<[1], [0], [0], [1], [0, 0, 1, 1], [], []>} : vector<4x32xbf16>, vector<32x128xbf16>, vector<4x128xf32> -> vector<4x128xf32>
    %142 = arith.addf %139, %141 : vector<4x128xf32>
    %143 = vector.broadcast %2 : vector<1x128xf32> to vector<4x128xf32>
    %144 = arith.addf %142, %143 : vector<4x128xf32>
    %145 = vector.extract_strided_slice %144 {offsets = [0, 0], sizes = [4, 32], strides = [1, 1]} : vector<4x128xf32> to vector<4x32xf32>
    %146 = arith.negf %145 : vector<4x32xf32>
    %147 = math.exp %146 : vector<4x32xf32>
    %cst_42 = arith.constant 1.000000e+00 : f32
    %148 = vector.broadcast %cst_42 : f32 to vector<4x32xf32>
    %149 = arith.addf %148, %147 : vector<4x32xf32>
    %150 = arith.divf %148, %149 : vector<4x32xf32>
    %151 = vector.extract_strided_slice %144 {offsets = [0, 32], sizes = [4, 32], strides = [1, 1]} : vector<4x128xf32> to vector<4x32xf32>
    %152 = arith.negf %151 : vector<4x32xf32>
    %153 = math.exp %152 : vector<4x32xf32>
    %cst_43 = arith.constant 1.000000e+00 : f32
    %154 = vector.broadcast %cst_43 : f32 to vector<4x32xf32>
    %155 = arith.addf %154, %153 : vector<4x32xf32>
    %156 = arith.divf %154, %155 : vector<4x32xf32>
    %157 = vector.extract_strided_slice %144 {offsets = [0, 64], sizes = [4, 32], strides = [1, 1]} : vector<4x128xf32> to vector<4x32xf32>
    %158 = math.tanh %157 : vector<4x32xf32>
    %159 = vector.extract_strided_slice %144 {offsets = [0, 96], sizes = [4, 32], strides = [1, 1]} : vector<4x128xf32> to vector<4x32xf32>
    %160 = arith.negf %159 : vector<4x32xf32>
    %161 = math.exp %160 : vector<4x32xf32>
    %cst_44 = arith.constant 1.000000e+00 : f32
    %162 = vector.broadcast %cst_44 : f32 to vector<4x32xf32>
    %163 = arith.addf %162, %161 : vector<4x32xf32>
    %164 = arith.divf %162, %163 : vector<4x32xf32>
    %165 = arith.mulf %156, %119 : vector<4x32xf32>
    %166 = arith.mulf %150, %158 : vector<4x32xf32>
    %167 = arith.addf %165, %166 : vector<4x32xf32>
    %168 = math.tanh %167 : vector<4x32xf32>
    %169 = arith.mulf %164, %168 : vector<4x32xf32>
    %170 = arith.truncf %169 : vector<4x32xf32> to vector<4x32xbf16>
    %cst_45 = arith.constant dense<0.000000e+00> : vector<4x128xf32>
    %171 = tpu.matmul %170, %3, %cst_45 {dimension_numbers = #tpu.dot_dimension_numbers<[1], [0], [0], [1], [0, 0, 1, 1], [], []>} : vector<4x32xbf16>, vector<32x128xbf16>, vector<4x128xf32> -> vector<4x128xf32>
    %172 = vector.broadcast %4 : vector<1x128xf32> to vector<4x128xf32>
    %173 = arith.addf %171, %172 : vector<4x128xf32>
    %174 = vector.broadcast %c2_i32 : i32 to vector<4x1xi32>
    %175 = arith.cmpi sgt, %5, %174 : vector<4x1xi32>
    %176 = arith.extui %175 : vector<4x1xi1> to vector<4x1xi32>
    %177 = arith.sitofp %176 : vector<4x1xi32> to vector<4x1xf32>
    %178 = vector.broadcast %177 : vector<4x1xf32> to vector<4x128xf32>
    %179 = arith.mulf %173, %178 : vector<4x128xf32>
    %180 = arith.index_cast %c2_i32 : i32 to index
    %c0_46 = arith.constant 0 : index
    %c0_47 = arith.constant 0 : index
    %181 = vector.load %arg9[%180, %c0_46, %c0_47] : memref<7x4x128xf32, #tpu.memory_space<vmem>>, vector<1x4x128xf32>
    %182 = vector.shape_cast %181 : vector<1x4x128xf32> to vector<4x128xf32>
    %183 = vector.shape_cast %179 : vector<4x128xf32> to vector<1x4x128xf32>
    tpu.vector_store %arg9[%180, %c0_46, %c0_47], %183 {strides = array<i32>} : memref<7x4x128xf32, #tpu.memory_space<vmem>>, vector<1x4x128xf32>,
    %c3_i32 = arith.constant 3 : i32
    %184 = arith.index_cast %c3_i32 : i32 to index
    %c0_48 = arith.constant 0 : index
    %c0_49 = arith.constant 0 : index
    %185 = vector.load %arg3[%184, %c0_48, %c0_49] : memref<7x4x32xbf16, #tpu.memory_space<vmem>>, vector<1x4x32xbf16>
    %186 = vector.shape_cast %185 : vector<1x4x32xbf16> to vector<4x32xbf16>
    %cst_50 = arith.constant dense<0.000000e+00> : vector<4x128xf32>
    %187 = tpu.matmul %186, %0, %cst_50 {dimension_numbers = #tpu.dot_dimension_numbers<[1], [0], [0], [1], [0, 0, 1, 1], [], []>} : vector<4x32xbf16>, vector<32x128xbf16>, vector<4x128xf32> -> vector<4x128xf32>
    %188 = arith.truncf %169 : vector<4x32xf32> to vector<4x32xbf16>
    %cst_51 = arith.constant dense<0.000000e+00> : vector<4x128xf32>
    %189 = tpu.matmul %188, %1, %cst_51 {dimension_numbers = #tpu.dot_dimension_numbers<[1], [0], [0], [1], [0, 0, 1, 1], [], []>} : vector<4x32xbf16>, vector<32x128xbf16>, vector<4x128xf32> -> vector<4x128xf32>
    %190 = arith.addf %187, %189 : vector<4x128xf32>
    %191 = vector.broadcast %2 : vector<1x128xf32> to vector<4x128xf32>
    %192 = arith.addf %190, %191 : vector<4x128xf32>
    %193 = vector.extract_strided_slice %192 {offsets = [0, 0], sizes = [4, 32], strides = [1, 1]} : vector<4x128xf32> to vector<4x32xf32>
    %194 = arith.negf %193 : vector<4x32xf32>
    %195 = math.exp %194 : vector<4x32xf32>
    %cst_52 = arith.constant 1.000000e+00 : f32
    %196 = vector.broadcast %cst_52 : f32 to vector<4x32xf32>
    %197 = arith.addf %196, %195 : vector<4x32xf32>
    %198 = arith.divf %196, %197 : vector<4x32xf32>
    %199 = vector.extract_strided_slice %192 {offsets = [0, 32], sizes = [4, 32], strides = [1, 1]} : vector<4x128xf32> to vector<4x32xf32>
    %200 = arith.negf %199 : vector<4x32xf32>
    %201 = math.exp %200 : vector<4x32xf32>
    %cst_53 = arith.constant 1.000000e+00 : f32
    %202 = vector.broadcast %cst_53 : f32 to vector<4x32xf32>
    %203 = arith.addf %202, %201 : vector<4x32xf32>
    %204 = arith.divf %202, %203 : vector<4x32xf32>
    %205 = vector.extract_strided_slice %192 {offsets = [0, 64], sizes = [4, 32], strides = [1, 1]} : vector<4x128xf32> to vector<4x32xf32>
    %206 = math.tanh %205 : vector<4x32xf32>
    %207 = vector.extract_strided_slice %192 {offsets = [0, 96], sizes = [4, 32], strides = [1, 1]} : vector<4x128xf32> to vector<4x32xf32>
    %208 = arith.negf %207 : vector<4x32xf32>
    %209 = math.exp %208 : vector<4x32xf32>
    %cst_54 = arith.constant 1.000000e+00 : f32
    %210 = vector.broadcast %cst_54 : f32 to vector<4x32xf32>
    %211 = arith.addf %210, %209 : vector<4x32xf32>
    %212 = arith.divf %210, %211 : vector<4x32xf32>
    %213 = arith.mulf %204, %167 : vector<4x32xf32>
    %214 = arith.mulf %198, %206 : vector<4x32xf32>
    %215 = arith.addf %213, %214 : vector<4x32xf32>
    %216 = math.tanh %215 : vector<4x32xf32>
    %217 = arith.mulf %212, %216 : vector<4x32xf32>
    %218 = arith.truncf %217 : vector<4x32xf32> to vector<4x32xbf16>
    %cst_55 = arith.constant dense<0.000000e+00> : vector<4x128xf32>
    %219 = tpu.matmul %218, %3, %cst_55 {dimension_numbers = #tpu.dot_dimension_numbers<[1], [0], [0], [1], [0, 0, 1, 1], [], []>} : vector<4x32xbf16>, vector<32x128xbf16>, vector<4x128xf32> -> vector<4x128xf32>
    %220 = vector.broadcast %4 : vector<1x128xf32> to vector<4x128xf32>
    %221 = arith.addf %219, %220 : vector<4x128xf32>
    %222 = vector.broadcast %c3_i32 : i32 to vector<4x1xi32>
    %223 = arith.cmpi sgt, %5, %222 : vector<4x1xi32>
    %224 = arith.extui %223 : vector<4x1xi1> to vector<4x1xi32>
    %225 = arith.sitofp %224 : vector<4x1xi32> to vector<4x1xf32>
    %226 = vector.broadcast %225 : vector<4x1xf32> to vector<4x128xf32>
    %227 = arith.mulf %221, %226 : vector<4x128xf32>
    %228 = arith.index_cast %c3_i32 : i32 to index
    %c0_56 = arith.constant 0 : index
    %c0_57 = arith.constant 0 : index
    %229 = vector.load %arg9[%228, %c0_56, %c0_57] : memref<7x4x128xf32, #tpu.memory_space<vmem>>, vector<1x4x128xf32>
    %230 = vector.shape_cast %229 : vector<1x4x128xf32> to vector<4x128xf32>
    %231 = vector.shape_cast %227 : vector<4x128xf32> to vector<1x4x128xf32>
    tpu.vector_store %arg9[%228, %c0_56, %c0_57], %231 {strides = array<i32>} : memref<7x4x128xf32, #tpu.memory_space<vmem>>, vector<1x4x128xf32>,
    %c4_i32 = arith.constant 4 : i32
    %232 = arith.index_cast %c4_i32 : i32 to index
    %c0_58 = arith.constant 0 : index
    %c0_59 = arith.constant 0 : index
    %233 = vector.load %arg3[%232, %c0_58, %c0_59] : memref<7x4x32xbf16, #tpu.memory_space<vmem>>, vector<1x4x32xbf16>
    %234 = vector.shape_cast %233 : vector<1x4x32xbf16> to vector<4x32xbf16>
    %cst_60 = arith.constant dense<0.000000e+00> : vector<4x128xf32>
    %235 = tpu.matmul %234, %0, %cst_60 {dimension_numbers = #tpu.dot_dimension_numbers<[1], [0], [0], [1], [0, 0, 1, 1], [], []>} : vector<4x32xbf16>, vector<32x128xbf16>, vector<4x128xf32> -> vector<4x128xf32>
    %236 = arith.truncf %217 : vector<4x32xf32> to vector<4x32xbf16>
    %cst_61 = arith.constant dense<0.000000e+00> : vector<4x128xf32>
    %237 = tpu.matmul %236, %1, %cst_61 {dimension_numbers = #tpu.dot_dimension_numbers<[1], [0], [0], [1], [0, 0, 1, 1], [], []>} : vector<4x32xbf16>, vector<32x128xbf16>, vector<4x128xf32> -> vector<4x128xf32>
    %238 = arith.addf %235, %237 : vector<4x128xf32>
    %239 = vector.broadcast %2 : vector<1x128xf32> to vector<4x128xf32>
    %240 = arith.addf %238, %239 : vector<4x128xf32>
    %241 = vector.extract_strided_slice %240 {offsets = [0, 0], sizes = [4, 32], strides = [1, 1]} : vector<4x128xf32> to vector<4x32xf32>
    %242 = arith.negf %241 : vector<4x32xf32>
    %243 = math.exp %242 : vector<4x32xf32>
    %cst_62 = arith.constant 1.000000e+00 : f32
    %244 = vector.broadcast %cst_62 : f32 to vector<4x32xf32>
    %245 = arith.addf %244, %243 : vector<4x32xf32>
    %246 = arith.divf %244, %245 : vector<4x32xf32>
    %247 = vector.extract_strided_slice %240 {offsets = [0, 32], sizes = [4, 32], strides = [1, 1]} : vector<4x128xf32> to vector<4x32xf32>
    %248 = arith.negf %247 : vector<4x32xf32>
    %249 = math.exp %248 : vector<4x32xf32>
    %cst_63 = arith.constant 1.000000e+00 : f32
    %250 = vector.broadcast %cst_63 : f32 to vector<4x32xf32>
    %251 = arith.addf %250, %249 : vector<4x32xf32>
    %252 = arith.divf %250, %251 : vector<4x32xf32>
    %253 = vector.extract_strided_slice %240 {offsets = [0, 64], sizes = [4, 32], strides = [1, 1]} : vector<4x128xf32> to vector<4x32xf32>
    %254 = math.tanh %253 : vector<4x32xf32>
    %255 = vector.extract_strided_slice %240 {offsets = [0, 96], sizes = [4, 32], strides = [1, 1]} : vector<4x128xf32> to vector<4x32xf32>
    %256 = arith.negf %255 : vector<4x32xf32>
    %257 = math.exp %256 : vector<4x32xf32>
    %cst_64 = arith.constant 1.000000e+00 : f32
    %258 = vector.broadcast %cst_64 : f32 to vector<4x32xf32>
    %259 = arith.addf %258, %257 : vector<4x32xf32>
    %260 = arith.divf %258, %259 : vector<4x32xf32>
    %261 = arith.mulf %252, %215 : vector<4x32xf32>
    %262 = arith.mulf %246, %254 : vector<4x32xf32>
    %263 = arith.addf %261, %262 : vector<4x32xf32>
    %264 = math.tanh %263 : vector<4x32xf32>
    %265 = arith.mulf %260, %264 : vector<4x32xf32>
    %266 = arith.truncf %265 : vector<4x32xf32> to vector<4x32xbf16>
    %cst_65 = arith.constant dense<0.000000e+00> : vector<4x128xf32>
    %267 = tpu.matmul %266, %3, %cst_65 {dimension_numbers = #tpu.dot_dimension_numbers<[1], [0], [0], [1], [0, 0, 1, 1], [], []>} : vector<4x32xbf16>, vector<32x128xbf16>, vector<4x128xf32> -> vector<4x128xf32>
    %268 = vector.broadcast %4 : vector<1x128xf32> to vector<4x128xf32>
    %269 = arith.addf %267, %268 : vector<4x128xf32>
    %270 = vector.broadcast %c4_i32 : i32 to vector<4x1xi32>
    %271 = arith.cmpi sgt, %5, %270 : vector<4x1xi32>
    %272 = arith.extui %271 : vector<4x1xi1> to vector<4x1xi32>
    %273 = arith.sitofp %272 : vector<4x1xi32> to vector<4x1xf32>
    %274 = vector.broadcast %273 : vector<4x1xf32> to vector<4x128xf32>
    %275 = arith.mulf %269, %274 : vector<4x128xf32>
    %276 = arith.index_cast %c4_i32 : i32 to index
    %c0_66 = arith.constant 0 : index
    %c0_67 = arith.constant 0 : index
    %277 = vector.load %arg9[%276, %c0_66, %c0_67] : memref<7x4x128xf32, #tpu.memory_space<vmem>>, vector<1x4x128xf32>
    %278 = vector.shape_cast %277 : vector<1x4x128xf32> to vector<4x128xf32>
    %279 = vector.shape_cast %275 : vector<4x128xf32> to vector<1x4x128xf32>
    tpu.vector_store %arg9[%276, %c0_66, %c0_67], %279 {strides = array<i32>} : memref<7x4x128xf32, #tpu.memory_space<vmem>>, vector<1x4x128xf32>,
    %c5_i32 = arith.constant 5 : i32
    %280 = arith.index_cast %c5_i32 : i32 to index
    %c0_68 = arith.constant 0 : index
    %c0_69 = arith.constant 0 : index
    %281 = vector.load %arg3[%280, %c0_68, %c0_69] : memref<7x4x32xbf16, #tpu.memory_space<vmem>>, vector<1x4x32xbf16>
    %282 = vector.shape_cast %281 : vector<1x4x32xbf16> to vector<4x32xbf16>
    %cst_70 = arith.constant dense<0.000000e+00> : vector<4x128xf32>
    %283 = tpu.matmul %282, %0, %cst_70 {dimension_numbers = #tpu.dot_dimension_numbers<[1], [0], [0], [1], [0, 0, 1, 1], [], []>} : vector<4x32xbf16>, vector<32x128xbf16>, vector<4x128xf32> -> vector<4x128xf32>
    %284 = arith.truncf %265 : vector<4x32xf32> to vector<4x32xbf16>
    %cst_71 = arith.constant dense<0.000000e+00> : vector<4x128xf32>
    %285 = tpu.matmul %284, %1, %cst_71 {dimension_numbers = #tpu.dot_dimension_numbers<[1], [0], [0], [1], [0, 0, 1, 1], [], []>} : vector<4x32xbf16>, vector<32x128xbf16>, vector<4x128xf32> -> vector<4x128xf32>
    %286 = arith.addf %283, %285 : vector<4x128xf32>
    %287 = vector.broadcast %2 : vector<1x128xf32> to vector<4x128xf32>
    %288 = arith.addf %286, %287 : vector<4x128xf32>
    %289 = vector.extract_strided_slice %288 {offsets = [0, 0], sizes = [4, 32], strides = [1, 1]} : vector<4x128xf32> to vector<4x32xf32>
    %290 = arith.negf %289 : vector<4x32xf32>
    %291 = math.exp %290 : vector<4x32xf32>
    %cst_72 = arith.constant 1.000000e+00 : f32
    %292 = vector.broadcast %cst_72 : f32 to vector<4x32xf32>
    %293 = arith.addf %292, %291 : vector<4x32xf32>
    %294 = arith.divf %292, %293 : vector<4x32xf32>
    %295 = vector.extract_strided_slice %288 {offsets = [0, 32], sizes = [4, 32], strides = [1, 1]} : vector<4x128xf32> to vector<4x32xf32>
    %296 = arith.negf %295 : vector<4x32xf32>
    %297 = math.exp %296 : vector<4x32xf32>
    %cst_73 = arith.constant 1.000000e+00 : f32
    %298 = vector.broadcast %cst_73 : f32 to vector<4x32xf32>
    %299 = arith.addf %298, %297 : vector<4x32xf32>
    %300 = arith.divf %298, %299 : vector<4x32xf32>
    %301 = vector.extract_strided_slice %288 {offsets = [0, 64], sizes = [4, 32], strides = [1, 1]} : vector<4x128xf32> to vector<4x32xf32>
    %302 = math.tanh %301 : vector<4x32xf32>
    %303 = vector.extract_strided_slice %288 {offsets = [0, 96], sizes = [4, 32], strides = [1, 1]} : vector<4x128xf32> to vector<4x32xf32>
    %304 = arith.negf %303 : vector<4x32xf32>
    %305 = math.exp %304 : vector<4x32xf32>
    %cst_74 = arith.constant 1.000000e+00 : f32
    %306 = vector.broadcast %cst_74 : f32 to vector<4x32xf32>
    %307 = arith.addf %306, %305 : vector<4x32xf32>
    %308 = arith.divf %306, %307 : vector<4x32xf32>
    %309 = arith.mulf %300, %263 : vector<4x32xf32>
    %310 = arith.mulf %294, %302 : vector<4x32xf32>
    %311 = arith.addf %309, %310 : vector<4x32xf32>
    %312 = math.tanh %311 : vector<4x32xf32>
    %313 = arith.mulf %308, %312 : vector<4x32xf32>
    %314 = arith.truncf %313 : vector<4x32xf32> to vector<4x32xbf16>
    %cst_75 = arith.constant dense<0.000000e+00> : vector<4x128xf32>
    %315 = tpu.matmul %314, %3, %cst_75 {dimension_numbers = #tpu.dot_dimension_numbers<[1], [0], [0], [1], [0, 0, 1, 1], [], []>} : vector<4x32xbf16>, vector<32x128xbf16>, vector<4x128xf32> -> vector<4x128xf32>
    %316 = vector.broadcast %4 : vector<1x128xf32> to vector<4x128xf32>
    %317 = arith.addf %315, %316 : vector<4x128xf32>
    %318 = vector.broadcast %c5_i32 : i32 to vector<4x1xi32>
    %319 = arith.cmpi sgt, %5, %318 : vector<4x1xi32>
    %320 = arith.extui %319 : vector<4x1xi1> to vector<4x1xi32>
    %321 = arith.sitofp %320 : vector<4x1xi32> to vector<4x1xf32>
    %322 = vector.broadcast %321 : vector<4x1xf32> to vector<4x128xf32>
    %323 = arith.mulf %317, %322 : vector<4x128xf32>
    %324 = arith.index_cast %c5_i32 : i32 to index
    %c0_76 = arith.constant 0 : index
    %c0_77 = arith.constant 0 : index
    %325 = vector.load %arg9[%324, %c0_76, %c0_77] : memref<7x4x128xf32, #tpu.memory_space<vmem>>, vector<1x4x128xf32>
    %326 = vector.shape_cast %325 : vector<1x4x128xf32> to vector<4x128xf32>
    %327 = vector.shape_cast %323 : vector<4x128xf32> to vector<1x4x128xf32>
    tpu.vector_store %arg9[%324, %c0_76, %c0_77], %327 {strides = array<i32>} : memref<7x4x128xf32, #tpu.memory_space<vmem>>, vector<1x4x128xf32>,
    %c6_i32 = arith.constant 6 : i32
    %328 = arith.index_cast %c6_i32 : i32 to index
    %c0_78 = arith.constant 0 : index
    %c0_79 = arith.constant 0 : index
    %329 = vector.load %arg3[%328, %c0_78, %c0_79] : memref<7x4x32xbf16, #tpu.memory_space<vmem>>, vector<1x4x32xbf16>
    %330 = vector.shape_cast %329 : vector<1x4x32xbf16> to vector<4x32xbf16>
    %cst_80 = arith.constant dense<0.000000e+00> : vector<4x128xf32>
    %331 = tpu.matmul %330, %0, %cst_80 {dimension_numbers = #tpu.dot_dimension_numbers<[1], [0], [0], [1], [0, 0, 1, 1], [], []>} : vector<4x32xbf16>, vector<32x128xbf16>, vector<4x128xf32> -> vector<4x128xf32>
    %332 = arith.truncf %313 : vector<4x32xf32> to vector<4x32xbf16>
    %cst_81 = arith.constant dense<0.000000e+00> : vector<4x128xf32>
    %333 = tpu.matmul %332, %1, %cst_81 {dimension_numbers = #tpu.dot_dimension_numbers<[1], [0], [0], [1], [0, 0, 1, 1], [], []>} : vector<4x32xbf16>, vector<32x128xbf16>, vector<4x128xf32> -> vector<4x128xf32>
    %334 = arith.addf %331, %333 : vector<4x128xf32>
    %335 = vector.broadcast %2 : vector<1x128xf32> to vector<4x128xf32>
    %336 = arith.addf %334, %335 : vector<4x128xf32>
    %337 = vector.extract_strided_slice %336 {offsets = [0, 0], sizes = [4, 32], strides = [1, 1]} : vector<4x128xf32> to vector<4x32xf32>
    %338 = arith.negf %337 : vector<4x32xf32>
    %339 = math.exp %338 : vector<4x32xf32>
    %cst_82 = arith.constant 1.000000e+00 : f32
    %340 = vector.broadcast %cst_82 : f32 to vector<4x32xf32>
    %341 = arith.addf %340, %339 : vector<4x32xf32>
    %342 = arith.divf %340, %341 : vector<4x32xf32>
    %343 = vector.extract_strided_slice %336 {offsets = [0, 32], sizes = [4, 32], strides = [1, 1]} : vector<4x128xf32> to vector<4x32xf32>
    %344 = arith.negf %343 : vector<4x32xf32>
    %345 = math.exp %344 : vector<4x32xf32>
    %cst_83 = arith.constant 1.000000e+00 : f32
    %346 = vector.broadcast %cst_83 : f32 to vector<4x32xf32>
    %347 = arith.addf %346, %345 : vector<4x32xf32>
    %348 = arith.divf %346, %347 : vector<4x32xf32>
    %349 = vector.extract_strided_slice %336 {offsets = [0, 64], sizes = [4, 32], strides = [1, 1]} : vector<4x128xf32> to vector<4x32xf32>
    %350 = math.tanh %349 : vector<4x32xf32>
    %351 = vector.extract_strided_slice %336 {offsets = [0, 96], sizes = [4, 32], strides = [1, 1]} : vector<4x128xf32> to vector<4x32xf32>
    %352 = arith.negf %351 : vector<4x32xf32>
    %353 = math.exp %352 : vector<4x32xf32>
    %cst_84 = arith.constant 1.000000e+00 : f32
    %354 = vector.broadcast %cst_84 : f32 to vector<4x32xf32>
    %355 = arith.addf %354, %353 : vector<4x32xf32>
    %356 = arith.divf %354, %355 : vector<4x32xf32>
    %357 = arith.mulf %348, %311 : vector<4x32xf32>
    %358 = arith.mulf %342, %350 : vector<4x32xf32>
    %359 = arith.addf %357, %358 : vector<4x32xf32>
    %360 = math.tanh %359 : vector<4x32xf32>
    %361 = arith.mulf %356, %360 : vector<4x32xf32>
    %362 = arith.truncf %361 : vector<4x32xf32> to vector<4x32xbf16>
    %cst_85 = arith.constant dense<0.000000e+00> : vector<4x128xf32>
    %363 = tpu.matmul %362, %3, %cst_85 {dimension_numbers = #tpu.dot_dimension_numbers<[1], [0], [0], [1], [0, 0, 1, 1], [], []>} : vector<4x32xbf16>, vector<32x128xbf16>, vector<4x128xf32> -> vector<4x128xf32>
    %364 = vector.broadcast %4 : vector<1x128xf32> to vector<4x128xf32>
    %365 = arith.addf %363, %364 : vector<4x128xf32>
    %366 = vector.broadcast %c6_i32 : i32 to vector<4x1xi32>
    %367 = arith.cmpi sgt, %5, %366 : vector<4x1xi32>
    %368 = arith.extui %367 : vector<4x1xi1> to vector<4x1xi32>
    %369 = arith.sitofp %368 : vector<4x1xi32> to vector<4x1xf32>
    %370 = vector.broadcast %369 : vector<4x1xf32> to vector<4x128xf32>
    %371 = arith.mulf %365, %370 : vector<4x128xf32>
    %372 = arith.index_cast %c6_i32 : i32 to index
    %c0_86 = arith.constant 0 : index
    %c0_87 = arith.constant 0 : index
    %373 = vector.load %arg9[%372, %c0_86, %c0_87] : memref<7x4x128xf32, #tpu.memory_space<vmem>>, vector<1x4x128xf32>
    %374 = vector.shape_cast %373 : vector<1x4x128xf32> to vector<4x128xf32>
    %375 = vector.shape_cast %371 : vector<4x128xf32> to vector<1x4x128xf32>
    tpu.vector_store %arg9[%372, %c0_86, %c0_87], %375 {strides = array<i32>} : memref<7x4x128xf32, #tpu.memory_space<vmem>>, vector<1x4x128xf32>,
    %c7_i32 = arith.constant 7 : i32
    return
  }
  func.func @transform_0(%arg0: i32) -> (i32, i32) {
    %c0_i32 = arith.constant 0 : i32
    %c0_i32_0 = arith.constant 0 : i32
    %c0_i32_1 = arith.constant 0 : i32
    return %c0_i32, %c0_i32_0 : i32, i32
  }
  func.func @transform_1(%arg0: i32) -> (i32, i32) {
    %c0_i32 = arith.constant 0 : i32
    %c0_i32_0 = arith.constant 0 : i32
    %c0_i32_1 = arith.constant 0 : i32
    return %c0_i32, %c0_i32_0 : i32, i32
  }
  func.func @transform_2(%arg0: i32) -> (i32, i32, i32) {
    %c0_i32 = arith.constant 0 : i32
    %c0_i32_0 = arith.constant 0 : i32
    %c0_i32_1 = arith.constant 0 : i32
    %c0_i32_2 = arith.constant 0 : i32
    return %c0_i32, %c0_i32_0, %c0_i32_1 : i32, i32, i32
  }
  func.func @transform_3(%arg0: i32) -> (i32, i32) {
    %c0_i32 = arith.constant 0 : i32
    %c0_i32_0 = arith.constant 0 : i32
    %c0_i32_1 = arith.constant 0 : i32
    return %c0_i32, %c0_i32_0 : i32, i32
  }
  func.func @transform_4(%arg0: i32) -> (i32, i32) {
    %c0_i32 = arith.constant 0 : i32
    %c0_i32_0 = arith.constant 0 : i32
    %c0_i32_1 = arith.constant 0 : i32
    return %c0_i32, %c0_i32_0 : i32, i32
  }
  func.func @transform_5(%arg0: i32) -> (i32, i32) {
    %c0_i32 = arith.constant 0 : i32
    %c0_i32_0 = arith.constant 0 : i32
    %c0_i32_1 = arith.constant 0 : i32
    return %c0_i32, %c0_i32_0 : i32, i32
  }
  func.func @transform_6(%arg0: i32) -> (i32, i32) {
    %c0_i32 = arith.constant 0 : i32
    %c0_i32_0 = arith.constant 0 : i32
    %c0_i32_1 = arith.constant 0 : i32
    return %c0_i32, %c0_i32_0 : i32, i32
  }
  func.func @transform_7(%arg0: i32) -> (i32, i32) {
    %c0_i32 = arith.constant 0 : i32
    %c0_i32_0 = arith.constant 0 : i32
    %c0_i32_1 = arith.constant 0 : i32
    return %c0_i32, %c0_i32_0 : i32, i32
  }
  func.func @transform_8(%arg0: i32) -> (i32, i32, i32) {
    %c0_i32 = arith.constant 0 : i32
    %c0_i32_0 = arith.constant 0 : i32
    %c0_i32_1 = arith.constant 0 : i32
    %c0_i32_2 = arith.constant 0 : i32
    return %c0_i32, %c0_i32_0, %c0_i32_1 : i32, i32, i32
  }
}

</mosaic_0001>

<llo_original>
// kernel: tpu_custom_call.1
$region0: #{tpu_custom_call.1}
  #allocation0 [shape = 'u32[]', space=smem, size = 0x4, offset = 0x4, fixed_abs, tag = 'smem constant byte address 0x4 - core index']
  #allocation1 [shape = 'u32[144,128]{1,0:T(1,128)}', space=vmem, size = 0x12000, scoped, tag = 'internal scratch']
  %s0 = inlined_call_operand.vmem [shape: f32[4,32], index: 0, kind: input, shape index: {}]
  %s1 = inlined_call_operand.vmem [shape: s32[4,1], index: 1, kind: input, shape index: {}]
  %s2 = inlined_call_operand.hbm [shape: bf16[7,4,32], index: 2, kind: input, shape index: {}]
  %s3 = inlined_call_operand.hbm [shape: bf16[32,128], index: 3, kind: input, shape index: {}]
  %s4 = inlined_call_operand.hbm [shape: bf16[32,128], index: 4, kind: input, shape index: {}]
  %s5 = inlined_call_operand.vmem [shape: f32[1,128], index: 5, kind: input, shape index: {}]
  %s6 = inlined_call_operand.hbm [shape: bf16[32,128], index: 6, kind: input, shape index: {}]
  %s7 = inlined_call_operand.vmem [shape: f32[1,128], index: 7, kind: input, shape index: {}]
  %s8 = inlined_call_operand.hbm [shape: f32[7,4,128], index: 8, kind: output, shape index: {}]
  %s9 = sld [smem:[#allocation0]]
  $region58: #{tpu_custom_call.1} parent=0
    _
  %s11 = ssub.s32 1, %s9
  %s12 = scalar_select 0, %s11, %s9
  $region1: #{tpu_custom_call.1} parent=0
    #allocation2 [shape = 'u8[7168]{0}', space=vmem, size = 0x1c00, scoped, tag = 'input window, operand 2, single buffered']
    #allocation3 [shape = 's32[1]{0}', space=sflag, size = 0x4, scoped, tag = 'scoped memory for tpu_custom_call.1']
    #allocation4 [shape = 's32[1]{0}', space=sflag, size = 0x4, scoped, tag = 'scoped memory for tpu_custom_call.1']
    #allocation5 [shape = 'u8[8192]{0}', space=vmem, size = 0x2000, scoped, tag = 'input window, operand 3, single buffered']
    #allocation6 [shape = 's32[1]{0}', space=sflag, size = 0x4, scoped, tag = 'scoped memory for tpu_custom_call.1']
    #allocation7 [shape = 'u8[8192]{0}', space=vmem, size = 0x2000, scoped, tag = 'input window, operand 4, single buffered']
    #allocation8 [shape = 'u8[8192]{0}', space=vmem, size = 0x2000, scoped, tag = 'input window, operand 6, single buffered']
    #allocation9 [shape = 's32[1]{0}', space=sflag, size = 0x4, scoped, tag = 'scoped memory for tpu_custom_call.1']
    #allocation10 [shape = 'u8[14336]{0}', space=vmem, size = 0x3800, scoped, tag = 'output window, operand 0, single buffered']
    %13 = vsyncpa [#allocation3], 0
    %14 = vsyncpa [#allocation6], 0
    %15 = vsyncpa [#allocation9], 0
    %16 = vsyncpa [#allocation4], 0
    // Predicated region
    $region2: #{tpu_custom_call.1} parent=1 // pred_check
      _
    $region3: #{tpu_custom_call.1} parent=1 // pred_check_branch
      %18 = sbr.rel (0) target = $region5
    $region4: #{tpu_custom_call.1} parent=1 // pred_region
      _
    $region5: #{tpu_custom_call.1} parent=1 // pred_fallthru
      _
    // Predicated region
    $region6: #{tpu_custom_call.1} parent=1 // pred_check
      _
    $region7: #{tpu_custom_call.1} parent=1 // pred_check_branch
      %20 = sbr.rel (0) target = $region9
    $region8: #{tpu_custom_call.1} parent=1 // pred_region
      _
    $region9: #{tpu_custom_call.1} parent=1 // pred_fallthru
      _
    // Predicated region
    $region10: #{tpu_custom_call.1} parent=1 // pred_check
      _
    $region11: #{tpu_custom_call.1} parent=1 // pred_check_branch
      %22 = sbr.rel (0) target = $region13
    $region12: #{tpu_custom_call.1} parent=1 // pred_region
      %s24 = ssub.s32 224, 224
      %25 = vsyncadd [#allocation3], %s24
      %s26 = sshll.u32 [#allocation2], 4
      %s27 = int_to_ptr.vmem [resolvable:$true] %s26
      %32 = dma.hbm_to_vmem [thread:$0]  %s2, 224, %s27, [#allocation3], 32, 32, 2
    $region13: #{tpu_custom_call.1} parent=1 // pred_fallthru
      _
    // Predicated region
    $region14: #{tpu_custom_call.1} parent=1 // pred_check
      _
    $region15: #{tpu_custom_call.1} parent=1 // pred_check_branch
      %34 = sbr.rel (0) target = $region17
    $region16: #{tpu_custom_call.1} parent=1 // pred_region
      %s36 = ssub.s32 256, 256
      %37 = vsyncadd [#allocation6], %s36
      %s38 = sshll.u32 [#allocation5], 4
      %s39 = int_to_ptr.vmem [resolvable:$true] %s38
      %44 = dma.hbm_to_vmem [thread:$0]  %s3, 256, %s39, [#allocation6], 64, 64, 4
    $region17: #{tpu_custom_call.1} parent=1 // pred_fallthru
      _
    // Predicated region
    $region18: #{tpu_custom_call.1} parent=1 // pred_check
      _
    $region19: #{tpu_custom_call.1} parent=1 // pred_check_branch
      %46 = sbr.rel (0) target = $region21
    $region20: #{tpu_custom_call.1} parent=1 // pred_region
      %s48 = ssub.s32 256, 256
      %49 = vsyncadd [#allocation6], %s48
      %s50 = sshll.u32 [#allocation7], 4
      %s51 = int_to_ptr.vmem [resolvable:$true] %s50
      %56 = dma.hbm_to_vmem [thread:$0]  %s4, 256, %s51, [#allocation6], 64, 64, 4
    $region21: #{tpu_custom_call.1} parent=1 // pred_fallthru
      _
    // Predicated region
    $region22: #{tpu_custom_call.1} parent=1 // pred_check
      _
    $region23: #{tpu_custom_call.1} parent=1 // pred_check_branch
      %58 = sbr.rel (0) target = $region25
    $region24: #{tpu_custom_call.1} parent=1 // pred_region
      _
    $region25: #{tpu_custom_call.1} parent=1 // pred_fallthru
      _
    // Predicated region
    $region26: #{tpu_custom_call.1} parent=1 // pred_check
      _
    $region27: #{tpu_custom_call.1} parent=1 // pred_check_branch
      %60 = sbr.rel (0) target = $region29
    $region28: #{tpu_custom_call.1} parent=1 // pred_region
      %s62 = ssub.s32 256, 256
      %63 = vsyncadd [#allocation9], %s62
      %s64 = sshll.u32 [#allocation8], 4
      %s65 = int_to_ptr.vmem [resolvable:$true] %s64
      %70 = dma.hbm_to_vmem [thread:$0]  %s6, 256, %s65, [#allocation9], 64, 64, 4
    $region29: #{tpu_custom_call.1} parent=1 // pred_fallthru
      _
    // Predicated region
    $region30: #{tpu_custom_call.1} parent=1 // pred_check
      _
    $region31: #{tpu_custom_call.1} parent=1 // pred_check_branch
      %72 = sbr.rel (0) target = $region33
    $region32: #{tpu_custom_call.1} parent=1 // pred_region
      _
    $region33: #{tpu_custom_call.1} parent=1 // pred_fallthru
      _
    // Predicated region
    $region34: #{tpu_custom_call.1} parent=1 // pred_check
      _
    $region35: #{tpu_custom_call.1} parent=1 // pred_check_branch
      %74 = sbr.rel (0) target = $region37
    $region36: #{tpu_custom_call.1} parent=1 // pred_region
      %75 = dma.done [#allocation3], 224
    $region37: #{tpu_custom_call.1} parent=1 // pred_fallthru
      _
    // Predicated region
    $region38: #{tpu_custom_call.1} parent=1 // pred_check
      _
    $region39: #{tpu_custom_call.1} parent=1 // pred_check_branch
      %77 = sbr.rel (0) target = $region41
    $region40: #{tpu_custom_call.1} parent=1 // pred_region
      %78 = dma.done [#allocation6], 256
    $region41: #{tpu_custom_call.1} parent=1 // pred_fallthru
      _
    // Predicated region
    $region42: #{tpu_custom_call.1} parent=1 // pred_check
      _
    $region43: #{tpu_custom_call.1} parent=1 // pred_check_branch
      %80 = sbr.rel (0) target = $region45
    $region44: #{tpu_custom_call.1} parent=1 // pred_region
      %81 = dma.done [#allocation6], 256
    $region45: #{tpu_custom_call.1} parent=1 // pred_fallthru
      _
    // Predicated region
    $region46: #{tpu_custom_call.1} parent=1 // pred_check
      _
    $region47: #{tpu_custom_call.1} parent=1 // pred_check_branch
      %83 = sbr.rel (0) target = $region49
    $region48: #{tpu_custom_call.1} parent=1 // pred_region
      %84 = dma.done [#allocation9], 256
    $region49: #{tpu_custom_call.1} parent=1 // pred_fallthru
      _
    %v86 = vld [vmem:[#allocation5] sm:$0xf]
    %v87 = vld [vmem:[#allocation5 + $0x4] sm:$0xf]
    %v88 = vld [vmem:[#allocation5 + $0x8] sm:$0xf]
    %v89 = vld [vmem:[#allocation5 + $0xc] sm:$0xf]
    %v90 = vld [vmem:[#allocation7] sm:$0xf]
    %v91 = vld [vmem:[#allocation7 + $0x4] sm:$0xf]
    %v92 = vld [vmem:[#allocation7 + $0x8] sm:$0xf]
    %v93 = vld [vmem:[#allocation7 + $0xc] sm:$0xf]
    %v94 = vld [vmem:[%s5] sm:$0x1]
    %v95 = vld [vmem:[#allocation8] sm:$0xf]
    %v96 = vld [vmem:[#allocation8 + $0x4] sm:$0xf]
    %v97 = vld [vmem:[#allocation8 + $0x8] sm:$0xf]
    %v98 = vld [vmem:[#allocation8 + $0xc] sm:$0xf]
    %v99 = vld [vmem:[%s7] sm:$0x1]
    %v100 = vld [vmem:[%s1] sm:$0xf]
    %v101 = vld [vmem:[%s0] sm:$0xf]
    %v102 = vpack.c.bf16 %v101, %v101
    %v107 = vunpack.c.l.b16 %v90
    %v108 = vunpack.c.l.b16 %v91
    %v109 = vunpack.c.l.b16 %v92
    %v110 = vunpack.c.l.b16 %v93
    %v111 = vpack.c.b16 %v108, %v107
    %v112 = vpack.c.b16 %v110, %v109
    %vm115 = vcmask 261120
    %v117 = vsel %vm115, 0, 0
    %119 = vmatprep.subr.bf16.mxu0 0
    %120 = vmatpush1.bf16.msra.mxu0 0
    %121 = vmatprep.subr.bf16.mxu0 0
    %122 = vmatpush1.bf16.msra.mxu0 0
    %123 = vmatprep.subr.bf16.mxu0 0
    %124 = vmatpush1.bf16.msra.mxu0 0
    %125 = vmatprep.subr.bf16.mxu0 0
    %126 = vmatpush1.bf16.msra.mxu0 0
    %127 = vmatprep.subr.bf16.mxu0 0
    %128 = vmatpush1.bf16.msra.mxu0 0
    %129 = vmatprep.subr.bf16.mxu0 0
    %130 = vmatpush1.bf16.msra.mxu0 0
    %131 = vmatprep.subr.bf16.mxu0 0
    %132 = vmatpush1.bf16.msra.mxu0 %v112
    %133 = vmatprep.subr.bf16.mxu0 0
    %134 = vmatpush1.bf16.msra.mxu0 %v111
    %135 = vmatprep.subr.bf16.mxu0 0
    %136 = vmatpush2.bf16.msra.mxu0 0
    %137 = vmatprep.subr.bf16.mxu0 0
    %138 = vmatpush2.bf16.msra.mxu0 0
    %139 = vmatprep.subr.bf16.mxu0 0
    %140 = vmatpush2.bf16.msra.mxu0 0
    %141 = vmatprep.subr.bf16.mxu0 0
    %142 = vmatpush2.bf16.msra.mxu0 0
    %143 = vmatprep.subr.bf16.mxu0 0
    %144 = vmatpush2.bf16.msra.mxu0 0
    %145 = vmatprep.subr.bf16.mxu0 0
    %146 = vmatpush2.bf16.msra.mxu0 0
    %147 = vmatprep.subr.bf16.mxu0 0
    %148 = vmatpush2.bf16.msra.mxu0 0
    %149 = vmatprep.subr.bf16.mxu0 0
    %150 = vmatpush2.bf16.msra.mxu0 0
    %151 = vmatprep.mubr.bf16.mxu0 0
    %152 = vmatmul.mubr.bf16.gmra.mxu0 %v117
    %v153 = vpop.f32.mrf.mxu0
    %v154 = vadd.f32 0.0, %v153
    %v155 = vpop.f32.mrf.mxu0
    %v156 = vpop.f32.mrf.mxu0
    %v157 = vpop.f32.mrf.mxu0
    %158 = vdwg.mxu0
    %v163 = vunpack.c.l.b16 %v86
    %v164 = vunpack.c.l.b16 %v87
    %v165 = vunpack.c.l.b16 %v88
    %v166 = vunpack.c.l.b16 %v89
    %v167 = vpack.c.b16 %v164, %v163
    %v168 = vpack.c.b16 %v166, %v165
    %v172 = vsel %vm115, %v102, 0
    %174 = vmatprep.subr.bf16.mxu0 0
    %175 = vmatpush1.bf16.msra.mxu0 0
    %176 = vmatprep.subr.bf16.mxu0 0
    %177 = vmatpush1.bf16.msra.mxu0 0
    %178 = vmatprep.subr.bf16.mxu0 0
    %179 = vmatpush1.bf16.msra.mxu0 0
    %180 = vmatprep.subr.bf16.mxu0 0
    %181 = vmatpush1.bf16.msra.mxu0 0
    %182 = vmatprep.subr.bf16.mxu0 0
    %183 = vmatpush1.bf16.msra.mxu0 0
    %184 = vmatprep.subr.bf16.mxu0 0
    %185 = vmatpush1.bf16.msra.mxu0 0
    %186 = vmatprep.subr.bf16.mxu0 0
    %187 = vmatpush1.bf16.msra.mxu0 %v168
    %188 = vmatprep.subr.bf16.mxu0 0
    %189 = vmatpush1.bf16.msra.mxu0 %v167
    %190 = vmatprep.subr.bf16.mxu0 0
    %191 = vmatpush2.bf16.msra.mxu0 0
    %192 = vmatprep.subr.bf16.mxu0 0
    %193 = vmatpush2.bf16.msra.mxu0 0
    %194 = vmatprep.subr.bf16.mxu0 0
    %195 = vmatpush2.bf16.msra.mxu0 0
    %196 = vmatprep.subr.bf16.mxu0 0
    %197 = vmatpush2.bf16.msra.mxu0 0
    %198 = vmatprep.subr.bf16.mxu0 0
    %199 = vmatpush2.bf16.msra.mxu0 0
    %200 = vmatprep.subr.bf16.mxu0 0
    %201 = vmatpush2.bf16.msra.mxu0 0
    %202 = vmatprep.subr.bf16.mxu0 0
    %203 = vmatpush2.bf16.msra.mxu0 0
    %204 = vmatprep.subr.bf16.mxu0 0
    %205 = vmatpush2.bf16.msra.mxu0 0
    %206 = vmatprep.mubr.bf16.mxu0 0
    %207 = vmatmul.mubr.bf16.gmra.mxu0 %v172
    %v208 = vpop.f32.mrf.mxu0
    %v209 = vadd.f32 %v154, %v208
    %v210 = vpop.f32.mrf.mxu0
    %v211 = vpop.f32.mrf.mxu0
    %v212 = vpop.f32.mrf.mxu0
    %213 = vdwg.mxu0
    %v215 = vlaneseq
    %v216 = vshrl.u32 %v215, 7
    %v217 = vsub.s32 0, %v216
    %v218 = vrot.slane %v94, %v217
    %v220 = vadd.f32 %v209, %v218
    %v221 = vxor.u32 %v220, 2147483648
    %v222 = vmul.f32 %v221, 1.442695
    %v223 = vpow.pop %v222
    %v224 = vadd.f32 %v223, 1.0
    %v225 = vrcp.pop %v224
    %v226 = vmul.f32 1.0, %v225
    %v227 = vtanh.pop %v220
    %v228 = vmul.f32 %v226, 0.0
    %230 = vrot.lane.b32.xlu0 %v227, 64
    %v231 = vpop.permute.xlu0 %230
    %v233 = vmul.f32 %v226, %v231
    %235 = vrot.lane.b32.xlu0 %v233, 32
    %v236 = vpop.permute.xlu0 %235
    %v238 = vadd.f32 %v228, %v236
    %v239 = vtanh.pop %v238
    %241 = vrot.lane.b32.xlu0 %v239, 64
    %v242 = vpop.permute.xlu0 %241
    %v244 = vmul.f32 %v226, %v242
    %v245 = vld [vmem:[#allocation2] sm:$0x3]
    %v246 = vpack.c.bf16 %v244, %v244
    %248 = vrot.lane.b32.xlu0 %v246, 32
    %v249 = vpop.permute.xlu0 %248
    %v251 = vsel %vm115, %v249, 0
    %253 = vmatprep.subr.bf16.mxu0 0
    %254 = vmatpush1.bf16.msra.mxu0 0
    %255 = vmatprep.subr.bf16.mxu0 0
    %256 = vmatpush1.bf16.msra.mxu0 0
    %257 = vmatprep.subr.bf16.mxu0 0
    %258 = vmatpush1.bf16.msra.mxu0 0
    %259 = vmatprep.subr.bf16.mxu0 0
    %260 = vmatpush1.bf16.msra.mxu0 0
    %261 = vmatprep.subr.bf16.mxu0 0
    %262 = vmatpush1.bf16.msra.mxu0 0
    %263 = vmatprep.subr.bf16.mxu0 0
    %264 = vmatpush1.bf16.msra.mxu0 0
    %265 = vmatprep.subr.bf16.mxu0 0
    %266 = vmatpush1.bf16.msra.mxu0 %v112
    %267 = vmatprep.subr.bf16.mxu0 0
    %268 = vmatpush1.bf16.msra.mxu0 %v111
    %269 = vmatprep.subr.bf16.mxu0 0
    %270 = vmatpush2.bf16.msra.mxu0 0
    %271 = vmatprep.subr.bf16.mxu0 0
    %272 = vmatpush2.bf16.msra.mxu0 0
    %273 = vmatprep.subr.bf16.mxu0 0
    %274 = vmatpush2.bf16.msra.mxu0 0
    %275 = vmatprep.subr.bf16.mxu0 0
    %276 = vmatpush2.bf16.msra.mxu0 0
    %277 = vmatprep.subr.bf16.mxu0 0
    %278 = vmatpush2.bf16.msra.mxu0 0
    %279 = vmatprep.subr.bf16.mxu0 0
    %280 = vmatpush2.bf16.msra.mxu0 0
    %281 = vmatprep.subr.bf16.mxu0 0
    %282 = vmatpush2.bf16.msra.mxu0 0
    %283 = vmatprep.subr.bf16.mxu0 0
    %284 = vmatpush2.bf16.msra.mxu0 0
    %285 = vmatprep.mubr.bf16.mxu0 0
    %286 = vmatmul.mubr.bf16.gmra.mxu0 %v251
    %v287 = vpop.f32.mrf.mxu0
    %v288 = vadd.f32 0.0, %v287
    %v289 = vpop.f32.mrf.mxu0
    %v290 = vpop.f32.mrf.mxu0
    %v291 = vpop.f32.mrf.mxu0
    %292 = vdwg.mxu0
    %v294 = vsel %vm115, %v245, 0
    %296 = vmatprep.subr.bf16.mxu0 0
    %297 = vmatpush1.bf16.msra.mxu0 0
    %298 = vmatprep.subr.bf16.mxu0 0
    %299 = vmatpush1.bf16.msra.mxu0 0
    %300 = vmatprep.subr.bf16.mxu0 0
    %301 = vmatpush1.bf16.msra.mxu0 0
    %302 = vmatprep.subr.bf16.mxu0 0
    %303 = vmatpush1.bf16.msra.mxu0 0
    %304 = vmatprep.subr.bf16.mxu0 0
    %305 = vmatpush1.bf16.msra.mxu0 0
    %306 = vmatprep.subr.bf16.mxu0 0
    %307 = vmatpush1.bf16.msra.mxu0 0
    %308 = vmatprep.subr.bf16.mxu0 0
    %309 = vmatpush1.bf16.msra.mxu0 %v168
    %310 = vmatprep.subr.bf16.mxu0 0
    %311 = vmatpush1.bf16.msra.mxu0 %v167
    %312 = vmatprep.subr.bf16.mxu0 0
    %313 = vmatpush2.bf16.msra.mxu0 0
    %314 = vmatprep.subr.bf16.mxu0 0
    %315 = vmatpush2.bf16.msra.mxu0 0
    %316 = vmatprep.subr.bf16.mxu0 0
    %317 = vmatpush2.bf16.msra.mxu0 0
    %318 = vmatprep.subr.bf16.mxu0 0
    %319 = vmatpush2.bf16.msra.mxu0 0
    %320 = vmatprep.subr.bf16.mxu0 0
    %321 = vmatpush2.bf16.msra.mxu0 0
    %322 = vmatprep.subr.bf16.mxu0 0
    %323 = vmatpush2.bf16.msra.mxu0 0
    %324 = vmatprep.subr.bf16.mxu0 0
    %325 = vmatpush2.bf16.msra.mxu0 0
    %326 = vmatprep.subr.bf16.mxu0 0
    %327 = vmatpush2.bf16.msra.mxu0 0
    %328 = vmatprep.mubr.bf16.mxu0 0
    %329 = vmatmul.mubr.bf16.gmra.mxu0 %v294
    %v330 = vpop.f32.mrf.mxu0
    %v331 = vadd.f32 %v288, %v330
    %v332 = vpop.f32.mrf.mxu0
    %v333 = vpop.f32.mrf.mxu0
    %v334 = vpop.f32.mrf.mxu0
    %335 = vdwg.mxu0
    %v336 = vadd.f32 %v331, %v218
    %v337 = vxor.u32 %v336, 2147483648
    %v338 = vmul.f32 %v337, 1.442695
    %v339 = vpow.pop %v338
    %v340 = vadd.f32 %v339, 1.0
    %v341 = vrcp.pop %v340
    %v342 = vmul.f32 1.0, %v341
    %v343 = vtanh.pop %v336
    %v344 = vmul.f32 %v342, %v238
    %346 = vrot.lane.b32.xlu0 %v343, 64
    %v347 = vpop.permute.xlu0 %346
    %v349 = vmul.f32 %v342, %v347
    %351 = vrot.lane.b32.xlu0 %v349, 32
    %v352 = vpop.permute.xlu0 %351
    %v354 = vadd.f32 %v344, %v352
    %v355 = vtanh.pop %v354
    %357 = vrot.lane.b32.xlu0 %v355, 64
    %v358 = vpop.permute.xlu0 %357
    %v360 = vmul.f32 %v342, %v358
    %v361 = vpack.c.bf16 %v360, %v360
    %v363 = vlaneseq
    %v364 = vshrl.u32 %v363, 7
    %v365 = vsub.s32 0, %v364
    %v366 = vrot.slane %v99, %v365
    %369 = vrot.lane.b32.xlu0 %v361, 32
    %v370 = vpop.permute.xlu0 %369
    %v375 = vunpack.c.l.b16 %v95
    %v376 = vunpack.c.l.b16 %v96
    %v377 = vunpack.c.l.b16 %v97
    %v378 = vunpack.c.l.b16 %v98
    %v379 = vpack.c.b16 %v376, %v375
    %v380 = vpack.c.b16 %v378, %v377
    %v384 = vsel %vm115, %v370, 0
    %386 = vmatprep.subr.bf16.mxu0 0
    %387 = vmatpush1.bf16.msra.mxu0 0
    %388 = vmatprep.subr.bf16.mxu0 0
    %389 = vmatpush1.bf16.msra.mxu0 0
    %390 = vmatprep.subr.bf16.mxu0 0
    %391 = vmatpush1.bf16.msra.mxu0 0
    %392 = vmatprep.subr.bf16.mxu0 0
    %393 = vmatpush1.bf16.msra.mxu0 0
    %394 = vmatprep.subr.bf16.mxu0 0
    %395 = vmatpush1.bf16.msra.mxu0 0
    %396 = vmatprep.subr.bf16.mxu0 0
    %397 = vmatpush1.bf16.msra.mxu0 0
    %398 = vmatprep.subr.bf16.mxu0 0
    %399 = vmatpush1.bf16.msra.mxu0 %v380
    %400 = vmatprep.subr.bf16.mxu0 0
    %401 = vmatpush1.bf16.msra.mxu0 %v379
    %402 = vmatprep.subr.bf16.mxu0 0
    %403 = vmatpush2.bf16.msra.mxu0 0
    %404 = vmatprep.subr.bf16.mxu0 0
    %405 = vmatpush2.bf16.msra.mxu0 0
    %406 = vmatprep.subr.bf16.mxu0 0
    %407 = vmatpush2.bf16.msra.mxu0 0
    %408 = vmatprep.subr.bf16.mxu0 0
    %409 = vmatpush2.bf16.msra.mxu0 0
    %410 = vmatprep.subr.bf16.mxu0 0
    %411 = vmatpush2.bf16.msra.mxu0 0
    %412 = vmatprep.subr.bf16.mxu0 0
    %413 = vmatpush2.bf16.msra.mxu0 0
    %414 = vmatprep.subr.bf16.mxu0 0
    %415 = vmatpush2.bf16.msra.mxu0 0
    %416 = vmatprep.subr.bf16.mxu0 0
    %417 = vmatpush2.bf16.msra.mxu0 0
    %418 = vmatprep.mubr.bf16.mxu0 0
    %419 = vmatmul.mubr.bf16.gmra.mxu0 %v384
    %v420 = vpop.f32.mrf.mxu0
    %v421 = vadd.f32 %v366, %v420
    %v422 = vpop.f32.mrf.mxu0
    %v423 = vpop.f32.mrf.mxu0
    %v424 = vpop.f32.mrf.mxu0
    %425 = vdwg.mxu0
    %vm426 = vcmp.gt.s32.totalorder %v100, 0
    %v427 = vsel %vm426, 1, 0
    %v428 = vcvt.s32.f32 %v427
    %430 = vset.pattern.permute.xlu0 0
    %431 = vperm.xlu0 %430, %v428
    %v432 = vpop.permute.xlu0 %431
    %v434 = vmul.f32 %v421, %v432
    %435 = vst [vmem:[#allocation10] sm:$0xf] %v434
    %s436 = scalar_lea.vmem [#allocation2], 2
    %v437 = vld [vmem:[%s436] sm:$0x3]
    %438 = vmatprep.subr.bf16.mxu0 0
    %439 = vmatpush1.bf16.msra.mxu0 0
    %440 = vmatprep.subr.bf16.mxu0 0
    %441 = vmatpush1.bf16.msra.mxu0 0
    %442 = vmatprep.subr.bf16.mxu0 0
    %443 = vmatpush1.bf16.msra.mxu0 0
    %444 = vmatprep.subr.bf16.mxu0 0
    %445 = vmatpush1.bf16.msra.mxu0 0
    %446 = vmatprep.subr.bf16.mxu0 0
    %447 = vmatpush1.bf16.msra.mxu0 0
    %448 = vmatprep.subr.bf16.mxu0 0
    %449 = vmatpush1.bf16.msra.mxu0 0
    %450 = vmatprep.subr.bf16.mxu0 0
    %451 = vmatpush1.bf16.msra.mxu0 %v112
    %452 = vmatprep.subr.bf16.mxu0 0
    %453 = vmatpush1.bf16.msra.mxu0 %v111
    %454 = vmatprep.subr.bf16.mxu0 0
    %455 = vmatpush2.bf16.msra.mxu0 0
    %456 = vmatprep.subr.bf16.mxu0 0
    %457 = vmatpush2.bf16.msra.mxu0 0
    %458 = vmatprep.subr.bf16.mxu0 0
    %459 = vmatpush2.bf16.msra.mxu0 0
    %460 = vmatprep.subr.bf16.mxu0 0
    %461 = vmatpush2.bf16.msra.mxu0 0
    %462 = vmatprep.subr.bf16.mxu0 0
    %463 = vmatpush2.bf16.msra.mxu0 0
    %464 = vmatprep.subr.bf16.mxu0 0
    %465 = vmatpush2.bf16.msra.mxu0 0
    %466 = vmatprep.subr.bf16.mxu0 0
    %467 = vmatpush2.bf16.msra.mxu0 0
    %468 = vmatprep.subr.bf16.mxu0 0
    %469 = vmatpush2.bf16.msra.mxu0 0
    %470 = vmatprep.mubr.bf16.mxu0 0
    %471 = vmatmul.mubr.bf16.gmra.mxu0 %v384
    %v472 = vpop.f32.mrf.mxu0
    %v473 = vadd.f32 0.0, %v472
    %v474 = vpop.f32.mrf.mxu0
    %v475 = vpop.f32.mrf.mxu0
    %v476 = vpop.f32.mrf.mxu0
    %477 = vdwg.mxu0
    %v479 = vsel %vm115, %v437, 0
    %481 = vmatprep.subr.bf16.mxu0 0
    %482 = vmatpush1.bf16.msra.mxu0 0
    %483 = vmatprep.subr.bf16.mxu0 0
    %484 = vmatpush1.bf16.msra.mxu0 0
    %485 = vmatprep.subr.bf16.mxu0 0
    %486 = vmatpush1.bf16.msra.mxu0 0
    %487 = vmatprep.subr.bf16.mxu0 0
    %488 = vmatpush1.bf16.msra.mxu0 0
    %489 = vmatprep.subr.bf16.mxu0 0
    %490 = vmatpush1.bf16.msra.mxu0 0
    %491 = vmatprep.subr.bf16.mxu0 0
    %492 = vmatpush1.bf16.msra.mxu0 0
    %493 = vmatprep.subr.bf16.mxu0 0
    %494 = vmatpush1.bf16.msra.mxu0 %v168
    %495 = vmatprep.subr.bf16.mxu0 0
    %496 = vmatpush1.bf16.msra.mxu0 %v167
    %497 = vmatprep.subr.bf16.mxu0 0
    %498 = vmatpush2.bf16.msra.mxu0 0
    %499 = vmatprep.subr.bf16.mxu0 0
    %500 = vmatpush2.bf16.msra.mxu0 0
    %501 = vmatprep.subr.bf16.mxu0 0
    %502 = vmatpush2.bf16.msra.mxu0 0
    %503 = vmatprep.subr.bf16.mxu0 0
    %504 = vmatpush2.bf16.msra.mxu0 0
    %505 = vmatprep.subr.bf16.mxu0 0
    %506 = vmatpush2.bf16.msra.mxu0 0
    %507 = vmatprep.subr.bf16.mxu0 0
    %508 = vmatpush2.bf16.msra.mxu0 0
    %509 = vmatprep.subr.bf16.mxu0 0
    %510 = vmatpush2.bf16.msra.mxu0 0
    %511 = vmatprep.subr.bf16.mxu0 0
    %512 = vmatpush2.bf16.msra.mxu0 0
    %513 = vmatprep.mubr.bf16.mxu0 0
    %514 = vmatmul.mubr.bf16.gmra.mxu0 %v479
    %v515 = vpop.f32.mrf.mxu0
    %v516 = vadd.f32 %v473, %v515
    %v517 = vpop.f32.mrf.mxu0
    %v518 = vpop.f32.mrf.mxu0
    %v519 = vpop.f32.mrf.mxu0
    %520 = vdwg.mxu0
    %v521 = vadd.f32 %v516, %v218
    %v522 = vxor.u32 %v521, 2147483648
    %v523 = vmul.f32 %v522, 1.442695
    %v524 = vpow.pop %v523
    %v525 = vadd.f32 %v524, 1.0
    %v526 = vrcp.pop %v525
    %v527 = vmul.f32 1.0, %v526
    %v528 = vtanh.pop %v521
    %v529 = vmul.f32 %v527, %v354
    %531 = vrot.lane.b32.xlu0 %v528, 64
    %v532 = vpop.permute.xlu0 %531
    %v534 = vmul.f32 %v527, %v532
    %536 = vrot.lane.b32.xlu0 %v534, 32
    %v537 = vpop.permute.xlu0 %536
    %v539 = vadd.f32 %v529, %v537
    %v540 = vtanh.pop %v539
    %542 = vrot.lane.b32.xlu0 %v540, 64
    %v543 = vpop.permute.xlu0 %542
    %v545 = vmul.f32 %v527, %v543
    %v546 = vpack.c.bf16 %v545, %v545
    %548 = vrot.lane.b32.xlu0 %v546, 32
    %v549 = vpop.permute.xlu0 %548
    %v551 = vsel %vm115, %v549, 0
    %553 = vmatprep.subr.bf16.mxu0 0
    %554 = vmatpush1.bf16.msra.mxu0 0
    %555 = vmatprep.subr.bf16.mxu0 0
    %556 = vmatpush1.bf16.msra.mxu0 0
    %557 = vmatprep.subr.bf16.mxu0 0
    %558 = vmatpush1.bf16.msra.mxu0 0
    %559 = vmatprep.subr.bf16.mxu0 0
    %560 = vmatpush1.bf16.msra.mxu0 0
    %561 = vmatprep.subr.bf16.mxu0 0
    %562 = vmatpush1.bf16.msra.mxu0 0
    %563 = vmatprep.subr.bf16.mxu0 0
    %564 = vmatpush1.bf16.msra.mxu0 0
    %565 = vmatprep.subr.bf16.mxu0 0
    %566 = vmatpush1.bf16.msra.mxu0 %v380
    %567 = vmatprep.subr.bf16.mxu0 0
    %568 = vmatpush1.bf16.msra.mxu0 %v379
    %569 = vmatprep.subr.bf16.mxu0 0
    %570 = vmatpush2.bf16.msra.mxu0 0
    %571 = vmatprep.subr.bf16.mxu0 0
    %572 = vmatpush2.bf16.msra.mxu0 0
    %573 = vmatprep.subr.bf16.mxu0 0
    %574 = vmatpush2.bf16.msra.mxu0 0
    %575 = vmatprep.subr.bf16.mxu0 0
    %576 = vmatpush2.bf16.msra.mxu0 0
    %577 = vmatprep.subr.bf16.mxu0 0
    %578 = vmatpush2.bf16.msra.mxu0 0
    %579 = vmatprep.subr.bf16.mxu0 0
    %580 = vmatpush2.bf16.msra.mxu0 0
    %581 = vmatprep.subr.bf16.mxu0 0
    %582 = vmatpush2.bf16.msra.mxu0 0
    %583 = vmatprep.subr.bf16.mxu0 0
    %584 = vmatpush2.bf16.msra.mxu0 0
    %585 = vmatprep.mubr.bf16.mxu0 0
    %586 = vmatmul.mubr.bf16.gmra.mxu0 %v551
    %v587 = vpop.f32.mrf.mxu0
    %v588 = vadd.f32 %v366, %v587
    %v589 = vpop.f32.mrf.mxu0
    %v590 = vpop.f32.mrf.mxu0
    %v591 = vpop.f32.mrf.mxu0
    %592 = vdwg.mxu0
    %vm593 = vcmp.gt.s32.totalorder %v100, 1
    %v594 = vsel %vm593, 1, 0
    %v595 = vcvt.s32.f32 %v594
    %597 = vset.pattern.permute.xlu0 0
    %598 = vperm.xlu0 %597, %v595
    %v599 = vpop.permute.xlu0 %598
    %v601 = vmul.f32 %v588, %v599
    %s602 = scalar_lea.vmem [#allocation10], 4
    %603 = vst [vmem:[%s602] sm:$0xf] %v601
    %s604 = scalar_lea.vmem [#allocation2], 4
    %v605 = vld [vmem:[%s604] sm:$0x3]
    %606 = vmatprep.subr.bf16.mxu0 0
    %607 = vmatpush1.bf16.msra.mxu0 0
    %608 = vmatprep.subr.bf16.mxu0 0
    %609 = vmatpush1.bf16.msra.mxu0 0
    %610 = vmatprep.subr.bf16.mxu0 0
    %611 = vmatpush1.bf16.msra.mxu0 0
    %612 = vmatprep.subr.bf16.mxu0 0
    %613 = vmatpush1.bf16.msra.mxu0 0
    %614 = vmatprep.subr.bf16.mxu0 0
    %615 = vmatpush1.bf16.msra.mxu0 0
    %616 = vmatprep.subr.bf16.mxu0 0
    %617 = vmatpush1.bf16.msra.mxu0 0
    %618 = vmatprep.subr.bf16.mxu0 0
    %619 = vmatpush1.bf16.msra.mxu0 %v112
    %620 = vmatprep.subr.bf16.mxu0 0
    %621 = vmatpush1.bf16.msra.mxu0 %v111
    %622 = vmatprep.subr.bf16.mxu0 0
    %623 = vmatpush2.bf16.msra.mxu0 0
    %624 = vmatprep.subr.bf16.mxu0 0
    %625 = vmatpush2.bf16.msra.mxu0 0
    %626 = vmatprep.subr.bf16.mxu0 0
    %627 = vmatpush2.bf16.msra.mxu0 0
    %628 = vmatprep.subr.bf16.mxu0 0
    %629 = vmatpush2.bf16.msra.mxu0 0
    %630 = vmatprep.subr.bf16.mxu0 0
    %631 = vmatpush2.bf16.msra.mxu0 0
    %632 = vmatprep.subr.bf16.mxu0 0
    %633 = vmatpush2.bf16.msra.mxu0 0
    %634 = vmatprep.subr.bf16.mxu0 0
    %635 = vmatpush2.bf16.msra.mxu0 0
    %636 = vmatprep.subr.bf16.mxu0 0
    %637 = vmatpush2.bf16.msra.mxu0 0
    %638 = vmatprep.mubr.bf16.mxu0 0
    %639 = vmatmul.mubr.bf16.gmra.mxu0 %v551
    %v640 = vpop.f32.mrf.mxu0
    %v641 = vadd.f32 0.0, %v640
    %v642 = vpop.f32.mrf.mxu0
    %v643 = vpop.f32.mrf.mxu0
    %v644 = vpop.f32.mrf.mxu0
    %645 = vdwg.mxu0
    %v647 = vsel %vm115, %v605, 0
    %649 = vmatprep.subr.bf16.mxu0 0
    %650 = vmatpush1.bf16.msra.mxu0 0
    %651 = vmatprep.subr.bf16.mxu0 0
    %652 = vmatpush1.bf16.msra.mxu0 0
    %653 = vmatprep.subr.bf16.mxu0 0
    %654 = vmatpush1.bf16.msra.mxu0 0
    %655 = vmatprep.subr.bf16.mxu0 0
    %656 = vmatpush1.bf16.msra.mxu0 0
    %657 = vmatprep.subr.bf16.mxu0 0
    %658 = vmatpush1.bf16.msra.mxu0 0
    %659 = vmatprep.subr.bf16.mxu0 0
    %660 = vmatpush1.bf16.msra.mxu0 0
    %661 = vmatprep.subr.bf16.mxu0 0
    %662 = vmatpush1.bf16.msra.mxu0 %v168
    %663 = vmatprep.subr.bf16.mxu0 0
    %664 = vmatpush1.bf16.msra.mxu0 %v167
    %665 = vmatprep.subr.bf16.mxu0 0
    %666 = vmatpush2.bf16.msra.mxu0 0
    %667 = vmatprep.subr.bf16.mxu0 0
    %668 = vmatpush2.bf16.msra.mxu0 0
    %669 = vmatprep.subr.bf16.mxu0 0
    %670 = vmatpush2.bf16.msra.mxu0 0
    %671 = vmatprep.subr.bf16.mxu0 0
    %672 = vmatpush2.bf16.msra.mxu0 0
    %673 = vmatprep.subr.bf16.mxu0 0
    %674 = vmatpush2.bf16.msra.mxu0 0
    %675 = vmatprep.subr.bf16.mxu0 0
    %676 = vmatpush2.bf16.msra.mxu0 0
    %677 = vmatprep.subr.bf16.mxu0 0
    %678 = vmatpush2.bf16.msra.mxu0 0
    %679 = vmatprep.subr.bf16.mxu0 0
    %680 = vmatpush2.bf16.msra.mxu0 0
    %681 = vmatprep.mubr.bf16.mxu0 0
    %682 = vmatmul.mubr.bf16.gmra.mxu0 %v647
    %v683 = vpop.f32.mrf.mxu0
    %v684 = vadd.f32 %v641, %v683
    %v685 = vpop.f32.mrf.mxu0
    %v686 = vpop.f32.mrf.mxu0
    %v687 = vpop.f32.mrf.mxu0
    %688 = vdwg.mxu0
    %v689 = vadd.f32 %v684, %v218
    %v690 = vxor.u32 %v689, 2147483648
    %v691 = vmul.f32 %v690, 1.442695
    %v692 = vpow.pop %v691
    %v693 = vadd.f32 %v692, 1.0
    %v694 = vrcp.pop %v693
    %v695 = vmul.f32 1.0, %v694
    %v696 = vtanh.pop %v689
    %v697 = vmul.f32 %v695, %v539
    %699 = vrot.lane.b32.xlu0 %v696, 64
    %v700 = vpop.permute.xlu0 %699
    %v702 = vmul.f32 %v695, %v700
    %704 = vrot.lane.b32.xlu0 %v702, 32
    %v705 = vpop.permute.xlu0 %704
    %v707 = vadd.f32 %v697, %v705
    %v708 = vtanh.pop %v707
    %710 = vrot.lane.b32.xlu0 %v708, 64
    %v711 = vpop.permute.xlu0 %710
    %v713 = vmul.f32 %v695, %v711
    %v714 = vpack.c.bf16 %v713, %v713
    %716 = vrot.lane.b32.xlu0 %v714, 32
    %v717 = vpop.permute.xlu0 %716
    %v719 = vsel %vm115, %v717, 0
    %721 = vmatprep.subr.bf16.mxu0 0
    %722 = vmatpush1.bf16.msra.mxu0 0
    %723 = vmatprep.subr.bf16.mxu0 0
    %724 = vmatpush1.bf16.msra.mxu0 0
    %725 = vmatprep.subr.bf16.mxu0 0
    %726 = vmatpush1.bf16.msra.mxu0 0
    %727 = vmatprep.subr.bf16.mxu0 0
    %728 = vmatpush1.bf16.msra.mxu0 0
    %729 = vmatprep.subr.bf16.mxu0 0
    %730 = vmatpush1.bf16.msra.mxu0 0
    %731 = vmatprep.subr.bf16.mxu0 0
    %732 = vmatpush1.bf16.msra.mxu0 0
    %733 = vmatprep.subr.bf16.mxu0 0
    %734 = vmatpush1.bf16.msra.mxu0 %v380
    %735 = vmatprep.subr.bf16.mxu0 0
    %736 = vmatpush1.bf16.msra.mxu0 %v379
    %737 = vmatprep.subr.bf16.mxu0 0
    %738 = vmatpush2.bf16.msra.mxu0 0
    %739 = vmatprep.subr.bf16.mxu0 0
    %740 = vmatpush2.bf16.msra.mxu0 0
    %741 = vmatprep.subr.bf16.mxu0 0
    %742 = vmatpush2.bf16.msra.mxu0 0
    %743 = vmatprep.subr.bf16.mxu0 0
    %744 = vmatpush2.bf16.msra.mxu0 0
    %745 = vmatprep.subr.bf16.mxu0 0
    %746 = vmatpush2.bf16.msra.mxu0 0
    %747 = vmatprep.subr.bf16.mxu0 0
    %748 = vmatpush2.bf16.msra.mxu0 0
    %749 = vmatprep.subr.bf16.mxu0 0
    %750 = vmatpush2.bf16.msra.mxu0 0
    %751 = vmatprep.subr.bf16.mxu0 0
    %752 = vmatpush2.bf16.msra.mxu0 0
    %753 = vmatprep.mubr.bf16.mxu0 0
    %754 = vmatmul.mubr.bf16.gmra.mxu0 %v719
    %v755 = vpop.f32.mrf.mxu0
    %v756 = vadd.f32 %v366, %v755
    %v757 = vpop.f32.mrf.mxu0
    %v758 = vpop.f32.mrf.mxu0
    %v759 = vpop.f32.mrf.mxu0
    %760 = vdwg.mxu0
    %vm761 = vcmp.gt.s32.totalorder %v100, 2
    %v762 = vsel %vm761, 1, 0
    %v763 = vcvt.s32.f32 %v762
    %765 = vset.pattern.permute.xlu0 0
    %766 = vperm.xlu0 %765, %v763
    %v767 = vpop.permute.xlu0 %766
    %v769 = vmul.f32 %v756, %v767
    %s770 = scalar_lea.vmem [#allocation10], 8
    %771 = vst [vmem:[%s770] sm:$0xf] %v769
    %s772 = scalar_lea.vmem [#allocation2], 6
    %v773 = vld [vmem:[%s772] sm:$0x3]
    %774 = vmatprep.subr.bf16.mxu0 0
    %775 = vmatpush1.bf16.msra.mxu0 0
    %776 = vmatprep.subr.bf16.mxu0 0
    %777 = vmatpush1.bf16.msra.mxu0 0
    %778 = vmatprep.subr.bf16.mxu0 0
    %779 = vmatpush1.bf16.msra.mxu0 0
    %780 = vmatprep.subr.bf16.mxu0 0
    %781 = vmatpush1.bf16.msra.mxu0 0
    %782 = vmatprep.subr.bf16.mxu0 0
    %783 = vmatpush1.bf16.msra.mxu0 0
    %784 = vmatprep.subr.bf16.mxu0 0
    %785 = vmatpush1.bf16.msra.mxu0 0
    %786 = vmatprep.subr.bf16.mxu0 0
    %787 = vmatpush1.bf16.msra.mxu0 %v112
    %788 = vmatprep.subr.bf16.mxu0 0
    %789 = vmatpush1.bf16.msra.mxu0 %v111
    %790 = vmatprep.subr.bf16.mxu0 0
    %791 = vmatpush2.bf16.msra.mxu0 0
    %792 = vmatprep.subr.bf16.mxu0 0
    %793 = vmatpush2.bf16.msra.mxu0 0
    %794 = vmatprep.subr.bf16.mxu0 0
    %795 = vmatpush2.bf16.msra.mxu0 0
    %796 = vmatprep.subr.bf16.mxu0 0
    %797 = vmatpush2.bf16.msra.mxu0 0
    %798 = vmatprep.subr.bf16.mxu0 0
    %799 = vmatpush2.bf16.msra.mxu0 0
    %800 = vmatprep.subr.bf16.mxu0 0
    %801 = vmatpush2.bf16.msra.mxu0 0
    %802 = vmatprep.subr.bf16.mxu0 0
    %803 = vmatpush2.bf16.msra.mxu0 0
    %804 = vmatprep.subr.bf16.mxu0 0
    %805 = vmatpush2.bf16.msra.mxu0 0
    %806 = vmatprep.mubr.bf16.mxu0 0
    %807 = vmatmul.mubr.bf16.gmra.mxu0 %v719
    %v808 = vpop.f32.mrf.mxu0
    %v809 = vadd.f32 0.0, %v808
    %v810 = vpop.f32.mrf.mxu0
    %v811 = vpop.f32.mrf.mxu0
    %v812 = vpop.f32.mrf.mxu0
    %813 = vdwg.mxu0
    %v815 = vsel %vm115, %v773, 0
    %817 = vmatprep.subr.bf16.mxu0 0
    %818 = vmatpush1.bf16.msra.mxu0 0
    %819 = vmatprep.subr.bf16.mxu0 0
    %820 = vmatpush1.bf16.msra.mxu0 0
    %821 = vmatprep.subr.bf16.mxu0 0
    %822 = vmatpush1.bf16.msra.mxu0 0
    %823 = vmatprep.subr.bf16.mxu0 0
    %824 = vmatpush1.bf16.msra.mxu0 0
    %825 = vmatprep.subr.bf16.mxu0 0
    %826 = vmatpush1.bf16.msra.mxu0 0
    %827 = vmatprep.subr.bf16.mxu0 0
    %828 = vmatpush1.bf16.msra.mxu0 0
    %829 = vmatprep.subr.bf16.mxu0 0
    %830 = vmatpush1.bf16.msra.mxu0 %v168
    %831 = vmatprep.subr.bf16.mxu0 0
    %832 = vmatpush1.bf16.msra.mxu0 %v167
    %833 = vmatprep.subr.bf16.mxu0 0
    %834 = vmatpush2.bf16.msra.mxu0 0
    %835 = vmatprep.subr.bf16.mxu0 0
    %836 = vmatpush2.bf16.msra.mxu0 0
    %837 = vmatprep.subr.bf16.mxu0 0
    %838 = vmatpush2.bf16.msra.mxu0 0
    %839 = vmatprep.subr.bf16.mxu0 0
    %840 = vmatpush2.bf16.msra.mxu0 0
    %841 = vmatprep.subr.bf16.mxu0 0
    %842 = vmatpush2.bf16.msra.mxu0 0
    %843 = vmatprep.subr.bf16.mxu0 0
    %844 = vmatpush2.bf16.msra.mxu0 0
    %845 = vmatprep.subr.bf16.mxu0 0
    %846 = vmatpush2.bf16.msra.mxu0 0
    %847 = vmatprep.subr.bf16.mxu0 0
    %848 = vmatpush2.bf16.msra.mxu0 0
    %849 = vmatprep.mubr.bf16.mxu0 0
    %850 = vmatmul.mubr.bf16.gmra.mxu0 %v815
    %v851 = vpop.f32.mrf.mxu0
    %v852 = vadd.f32 %v809, %v851
    %v853 = vpop.f32.mrf.mxu0
    %v854 = vpop.f32.mrf.mxu0
    %v855 = vpop.f32.mrf.mxu0
    %856 = vdwg.mxu0
    %v857 = vadd.f32 %v852, %v218
    %v858 = vxor.u32 %v857, 2147483648
    %v859 = vmul.f32 %v858, 1.442695
    %v860 = vpow.pop %v859
    %v861 = vadd.f32 %v860, 1.0
    %v862 = vrcp.pop %v861
    %v863 = vmul.f32 1.0, %v862
    %v864 = vtanh.pop %v857
    %v865 = vmul.f32 %v863, %v707
    %867 = vrot.lane.b32.xlu0 %v864, 64
    %v868 = vpop.permute.xlu0 %867
    %v870 = vmul.f32 %v863, %v868
    %872 = vrot.lane.b32.xlu0 %v870, 32
    %v873 = vpop.permute.xlu0 %872
    %v875 = vadd.f32 %v865, %v873
    %v876 = vtanh.pop %v875
    %878 = vrot.lane.b32.xlu0 %v876, 64
    %v879 = vpop.permute.xlu0 %878
    %v881 = vmul.f32 %v863, %v879
    %v882 = vpack.c.bf16 %v881, %v881
    %884 = vrot.lane.b32.xlu0 %v882, 32
    %v885 = vpop.permute.xlu0 %884
    %v887 = vsel %vm115, %v885, 0
    %889 = vmatprep.subr.bf16.mxu0 0
    %890 = vmatpush1.bf16.msra.mxu0 0
    %891 = vmatprep.subr.bf16.mxu0 0
    %892 = vmatpush1.bf16.msra.mxu0 0
    %893 = vmatprep.subr.bf16.mxu0 0
    %894 = vmatpush1.bf16.msra.mxu0 0
    %895 = vmatprep.subr.bf16.mxu0 0
    %896 = vmatpush1.bf16.msra.mxu0 0
    %897 = vmatprep.subr.bf16.mxu0 0
    %898 = vmatpush1.bf16.msra.mxu0 0
    %899 = vmatprep.subr.bf16.mxu0 0
    %900 = vmatpush1.bf16.msra.mxu0 0
    %901 = vmatprep.subr.bf16.mxu0 0
    %902 = vmatpush1.bf16.msra.mxu0 %v380
    %903 = vmatprep.subr.bf16.mxu0 0
    %904 = vmatpush1.bf16.msra.mxu0 %v379
    %905 = vmatprep.subr.bf16.mxu0 0
    %906 = vmatpush2.bf16.msra.mxu0 0
    %907 = vmatprep.subr.bf16.mxu0 0
    %908 = vmatpush2.bf16.msra.mxu0 0
    %909 = vmatprep.subr.bf16.mxu0 0
    %910 = vmatpush2.bf16.msra.mxu0 0
    %911 = vmatprep.subr.bf16.mxu0 0
    %912 = vmatpush2.bf16.msra.mxu0 0
    %913 = vmatprep.subr.bf16.mxu0 0
    %914 = vmatpush2.bf16.msra.mxu0 0
    %915 = vmatprep.subr.bf16.mxu0 0
    %916 = vmatpush2.bf16.msra.mxu0 0
    %917 = vmatprep.subr.bf16.mxu0 0
    %918 = vmatpush2.bf16.msra.mxu0 0
    %919 = vmatprep.subr.bf16.mxu0 0
    %920 = vmatpush2.bf16.msra.mxu0 0
    %921 = vmatprep.mubr.bf16.mxu0 0
    %922 = vmatmul.mubr.bf16.gmra.mxu0 %v887
    %v923 = vpop.f32.mrf.mxu0
    %v924 = vadd.f32 %v366, %v923
    %v925 = vpop.f32.mrf.mxu0
    %v926 = vpop.f32.mrf.mxu0
    %v927 = vpop.f32.mrf.mxu0
    %928 = vdwg.mxu0
    %vm929 = vcmp.gt.s32.totalorder %v100, 3
    %v930 = vsel %vm929, 1, 0
    %v931 = vcvt.s32.f32 %v930
    %933 = vset.pattern.permute.xlu0 0
    %934 = vperm.xlu0 %933, %v931
    %v935 = vpop.permute.xlu0 %934
    %v937 = vmul.f32 %v924, %v935
    %s938 = scalar_lea.vmem [#allocation10], 12
    %939 = vst [vmem:[%s938] sm:$0xf] %v937
    %s940 = scalar_lea.vmem [#allocation2], 8
    %v941 = vld [vmem:[%s940] sm:$0x3]
    %942 = vmatprep.subr.bf16.mxu0 0
    %943 = vmatpush1.bf16.msra.mxu0 0
    %944 = vmatprep.subr.bf16.mxu0 0
    %945 = vmatpush1.bf16.msra.mxu0 0
    %946 = vmatprep.subr.bf16.mxu0 0
    %947 = vmatpush1.bf16.msra.mxu0 0
    %948 = vmatprep.subr.bf16.mxu0 0
    %949 = vmatpush1.bf16.msra.mxu0 0
    %950 = vmatprep.subr.bf16.mxu0 0
    %951 = vmatpush1.bf16.msra.mxu0 0
    %952 = vmatprep.subr.bf16.mxu0 0
    %953 = vmatpush1.bf16.msra.mxu0 0
    %954 = vmatprep.subr.bf16.mxu0 0
    %955 = vmatpush1.bf16.msra.mxu0 %v112
    %956 = vmatprep.subr.bf16.mxu0 0
    %957 = vmatpush1.bf16.msra.mxu0 %v111
    %958 = vmatprep.subr.bf16.mxu0 0
    %959 = vmatpush2.bf16.msra.mxu0 0
    %960 = vmatprep.subr.bf16.mxu0 0
    %961 = vmatpush2.bf16.msra.mxu0 0
    %962 = vmatprep.subr.bf16.mxu0 0
    %963 = vmatpush2.bf16.msra.mxu0 0
    %964 = vmatprep.subr.bf16.mxu0 0
    %965 = vmatpush2.bf16.msra.mxu0 0
    %966 = vmatprep.subr.bf16.mxu0 0
    %967 = vmatpush2.bf16.msra.mxu0 0
    %968 = vmatprep.subr.bf16.mxu0 0
    %969 = vmatpush2.bf16.msra.mxu0 0
    %970 = vmatprep.subr.bf16.mxu0 0
    %971 = vmatpush2.bf16.msra.mxu0 0
    %972 = vmatprep.subr.bf16.mxu0 0
    %973 = vmatpush2.bf16.msra.mxu0 0
    %974 = vmatprep.mubr.bf16.mxu0 0
    %975 = vmatmul.mubr.bf16.gmra.mxu0 %v887
    %v976 = vpop.f32.mrf.mxu0
    %v977 = vadd.f32 0.0, %v976
    %v978 = vpop.f32.mrf.mxu0
    %v979 = vpop.f32.mrf.mxu0
    %v980 = vpop.f32.mrf.mxu0
    %981 = vdwg.mxu0
    %v983 = vsel %vm115, %v941, 0
    %985 = vmatprep.subr.bf16.mxu0 0
    %986 = vmatpush1.bf16.msra.mxu0 0
    %987 = vmatprep.subr.bf16.mxu0 0
    %988 = vmatpush1.bf16.msra.mxu0 0
    %989 = vmatprep.subr.bf16.mxu0 0
    %990 = vmatpush1.bf16.msra.mxu0 0
    %991 = vmatprep.subr.bf16.mxu0 0
    %992 = vmatpush1.bf16.msra.mxu0 0
    %993 = vmatprep.subr.bf16.mxu0 0
    %994 = vmatpush1.bf16.msra.mxu0 0
    %995 = vmatprep.subr.bf16.mxu0 0
    %996 = vmatpush1.bf16.msra.mxu0 0
    %997 = vmatprep.subr.bf16.mxu0 0
    %998 = vmatpush1.bf16.msra.mxu0 %v168
    %999 = vmatprep.subr.bf16.mxu0 0
    %1000 = vmatpush1.bf16.msra.mxu0 %v167
    %1001 = vmatprep.subr.bf16.mxu0 0
    %1002 = vmatpush2.bf16.msra.mxu0 0
    %1003 = vmatprep.subr.bf16.mxu0 0
    %1004 = vmatpush2.bf16.msra.mxu0 0
    %1005 = vmatprep.subr.bf16.mxu0 0
    %1006 = vmatpush2.bf16.msra.mxu0 0
    %1007 = vmatprep.subr.bf16.mxu0 0
    %1008 = vmatpush2.bf16.msra.mxu0 0
    %1009 = vmatprep.subr.bf16.mxu0 0
    %1010 = vmatpush2.bf16.msra.mxu0 0
    %1011 = vmatprep.subr.bf16.mxu0 0
    %1012 = vmatpush2.bf16.msra.mxu0 0
    %1013 = vmatprep.subr.bf16.mxu0 0
    %1014 = vmatpush2.bf16.msra.mxu0 0
    %1015 = vmatprep.subr.bf16.mxu0 0
    %1016 = vmatpush2.bf16.msra.mxu0 0
    %1017 = vmatprep.mubr.bf16.mxu0 0
    %1018 = vmatmul.mubr.bf16.gmra.mxu0 %v983
    %v1019 = vpop.f32.mrf.mxu0
    %v1020 = vadd.f32 %v977, %v1019
    %v1021 = vpop.f32.mrf.mxu0
    %v1022 = vpop.f32.mrf.mxu0
    %v1023 = vpop.f32.mrf.mxu0
    %1024 = vdwg.mxu0
    %v1025 = vadd.f32 %v1020, %v218
    %v1026 = vxor.u32 %v1025, 2147483648
    %v1027 = vmul.f32 %v1026, 1.442695
    %v1028 = vpow.pop %v1027
    %v1029 = vadd.f32 %v1028, 1.0
    %v1030 = vrcp.pop %v1029
    %v1031 = vmul.f32 1.0, %v1030
    %v1032 = vtanh.pop %v1025
    %v1033 = vmul.f32 %v1031, %v875
    %1035 = vrot.lane.b32.xlu0 %v1032, 64
    %v1036 = vpop.permute.xlu0 %1035
    %v1038 = vmul.f32 %v1031, %v1036
    %1040 = vrot.lane.b32.xlu0 %v1038, 32
    %v1041 = vpop.permute.xlu0 %1040
    %v1043 = vadd.f32 %v1033, %v1041
    %v1044 = vtanh.pop %v1043
    %1046 = vrot.lane.b32.xlu0 %v1044, 64
    %v1047 = vpop.permute.xlu0 %1046
    %v1049 = vmul.f32 %v1031, %v1047
    %v1050 = vpack.c.bf16 %v1049, %v1049
    %1052 = vrot.lane.b32.xlu0 %v1050, 32
    %v1053 = vpop.permute.xlu0 %1052
    %v1055 = vsel %vm115, %v1053, 0
    %1057 = vmatprep.subr.bf16.mxu0 0
    %1058 = vmatpush1.bf16.msra.mxu0 0
    %1059 = vmatprep.subr.bf16.mxu0 0
    %1060 = vmatpush1.bf16.msra.mxu0 0
    %1061 = vmatprep.subr.bf16.mxu0 0
    %1062 = vmatpush1.bf16.msra.mxu0 0
    %1063 = vmatprep.subr.bf16.mxu0 0
    %1064 = vmatpush1.bf16.msra.mxu0 0
    %1065 = vmatprep.subr.bf16.mxu0 0
    %1066 = vmatpush1.bf16.msra.mxu0 0
    %1067 = vmatprep.subr.bf16.mxu0 0
    %1068 = vmatpush1.bf16.msra.mxu0 0
    %1069 = vmatprep.subr.bf16.mxu0 0
    %1070 = vmatpush1.bf16.msra.mxu0 %v380
    %1071 = vmatprep.subr.bf16.mxu0 0
    %1072 = vmatpush1.bf16.msra.mxu0 %v379
    %1073 = vmatprep.subr.bf16.mxu0 0
    %1074 = vmatpush2.bf16.msra.mxu0 0
    %1075 = vmatprep.subr.bf16.mxu0 0
    %1076 = vmatpush2.bf16.msra.mxu0 0
    %1077 = vmatprep.subr.bf16.mxu0 0
    %1078 = vmatpush2.bf16.msra.mxu0 0
    %1079 = vmatprep.subr.bf16.mxu0 0
    %1080 = vmatpush2.bf16.msra.mxu0 0
    %1081 = vmatprep.subr.bf16.mxu0 0
    %1082 = vmatpush2.bf16.msra.mxu0 0
    %1083 = vmatprep.subr.bf16.mxu0 0
    %1084 = vmatpush2.bf16.msra.mxu0 0
    %1085 = vmatprep.subr.bf16.mxu0 0
    %1086 = vmatpush2.bf16.msra.mxu0 0
    %1087 = vmatprep.subr.bf16.mxu0 0
    %1088 = vmatpush2.bf16.msra.mxu0 0
    %1089 = vmatprep.mubr.bf16.mxu0 0
    %1090 = vmatmul.mubr.bf16.gmra.mxu0 %v1055
    %v1091 = vpop.f32.mrf.mxu0
    %v1092 = vadd.f32 %v366, %v1091
    %v1093 = vpop.f32.mrf.mxu0
    %v1094 = vpop.f32.mrf.mxu0
    %v1095 = vpop.f32.mrf.mxu0
    %1096 = vdwg.mxu0
    %vm1097 = vcmp.gt.s32.totalorder %v100, 4
    %v1098 = vsel %vm1097, 1, 0
    %v1099 = vcvt.s32.f32 %v1098
    %1101 = vset.pattern.permute.xlu0 0
    %1102 = vperm.xlu0 %1101, %v1099
    %v1103 = vpop.permute.xlu0 %1102
    %v1105 = vmul.f32 %v1092, %v1103
    %s1106 = scalar_lea.vmem [#allocation10], 16
    %1107 = vst [vmem:[%s1106] sm:$0xf] %v1105
    %s1108 = scalar_lea.vmem [#allocation2], 10
    %v1109 = vld [vmem:[%s1108] sm:$0x3]
    %1110 = vmatprep.subr.bf16.mxu0 0
    %1111 = vmatpush1.bf16.msra.mxu0 0
    %1112 = vmatprep.subr.bf16.mxu0 0
    %1113 = vmatpush1.bf16.msra.mxu0 0
    %1114 = vmatprep.subr.bf16.mxu0 0
    %1115 = vmatpush1.bf16.msra.mxu0 0
    %1116 = vmatprep.subr.bf16.mxu0 0
    %1117 = vmatpush1.bf16.msra.mxu0 0
    %1118 = vmatprep.subr.bf16.mxu0 0
    %1119 = vmatpush1.bf16.msra.mxu0 0
    %1120 = vmatprep.subr.bf16.mxu0 0
    %1121 = vmatpush1.bf16.msra.mxu0 0
    %1122 = vmatprep.subr.bf16.mxu0 0
    %1123 = vmatpush1.bf16.msra.mxu0 %v112
    %1124 = vmatprep.subr.bf16.mxu0 0
    %1125 = vmatpush1.bf16.msra.mxu0 %v111
    %1126 = vmatprep.subr.bf16.mxu0 0
    %1127 = vmatpush2.bf16.msra.mxu0 0
    %1128 = vmatprep.subr.bf16.mxu0 0
    %1129 = vmatpush2.bf16.msra.mxu0 0
    %1130 = vmatprep.subr.bf16.mxu0 0
    %1131 = vmatpush2.bf16.msra.mxu0 0
    %1132 = vmatprep.subr.bf16.mxu0 0
    %1133 = vmatpush2.bf16.msra.mxu0 0
    %1134 = vmatprep.subr.bf16.mxu0 0
    %1135 = vmatpush2.bf16.msra.mxu0 0
    %1136 = vmatprep.subr.bf16.mxu0 0
    %1137 = vmatpush2.bf16.msra.mxu0 0
    %1138 = vmatprep.subr.bf16.mxu0 0
    %1139 = vmatpush2.bf16.msra.mxu0 0
    %1140 = vmatprep.subr.bf16.mxu0 0
    %1141 = vmatpush2.bf16.msra.mxu0 0
    %1142 = vmatprep.mubr.bf16.mxu0 0
    %1143 = vmatmul.mubr.bf16.gmra.mxu0 %v1055
    %v1144 = vpop.f32.mrf.mxu0
    %v1145 = vadd.f32 0.0, %v1144
    %v1146 = vpop.f32.mrf.mxu0
    %v1147 = vpop.f32.mrf.mxu0
    %v1148 = vpop.f32.mrf.mxu0
    %1149 = vdwg.mxu0
    %v1151 = vsel %vm115, %v1109, 0
    %1153 = vmatprep.subr.bf16.mxu0 0
    %1154 = vmatpush1.bf16.msra.mxu0 0
    %1155 = vmatprep.subr.bf16.mxu0 0
    %1156 = vmatpush1.bf16.msra.mxu0 0
    %1157 = vmatprep.subr.bf16.mxu0 0
    %1158 = vmatpush1.bf16.msra.mxu0 0
    %1159 = vmatprep.subr.bf16.mxu0 0
    %1160 = vmatpush1.bf16.msra.mxu0 0
    %1161 = vmatprep.subr.bf16.mxu0 0
    %1162 = vmatpush1.bf16.msra.mxu0 0
    %1163 = vmatprep.subr.bf16.mxu0 0
    %1164 = vmatpush1.bf16.msra.mxu0 0
    %1165 = vmatprep.subr.bf16.mxu0 0
    %1166 = vmatpush1.bf16.msra.mxu0 %v168
    %1167 = vmatprep.subr.bf16.mxu0 0
    %1168 = vmatpush1.bf16.msra.mxu0 %v167
    %1169 = vmatprep.subr.bf16.mxu0 0
    %1170 = vmatpush2.bf16.msra.mxu0 0
    %1171 = vmatprep.subr.bf16.mxu0 0
    %1172 = vmatpush2.bf16.msra.mxu0 0
    %1173 = vmatprep.subr.bf16.mxu0 0
    %1174 = vmatpush2.bf16.msra.mxu0 0
    %1175 = vmatprep.subr.bf16.mxu0 0
    %1176 = vmatpush2.bf16.msra.mxu0 0
    %1177 = vmatprep.subr.bf16.mxu0 0
    %1178 = vmatpush2.bf16.msra.mxu0 0
    %1179 = vmatprep.subr.bf16.mxu0 0
    %1180 = vmatpush2.bf16.msra.mxu0 0
    %1181 = vmatprep.subr.bf16.mxu0 0
    %1182 = vmatpush2.bf16.msra.mxu0 0
    %1183 = vmatprep.subr.bf16.mxu0 0
    %1184 = vmatpush2.bf16.msra.mxu0 0
    %1185 = vmatprep.mubr.bf16.mxu0 0
    %1186 = vmatmul.mubr.bf16.gmra.mxu0 %v1151
    %v1187 = vpop.f32.mrf.mxu0
    %v1188 = vadd.f32 %v1145, %v1187
    %v1189 = vpop.f32.mrf.mxu0
    %v1190 = vpop.f32.mrf.mxu0
    %v1191 = vpop.f32.mrf.mxu0
    %1192 = vdwg.mxu0
    %v1193 = vadd.f32 %v1188, %v218
    %v1194 = vxor.u32 %v1193, 2147483648
    %v1195 = vmul.f32 %v1194, 1.442695
    %v1196 = vpow.pop %v1195
    %v1197 = vadd.f32 %v1196, 1.0
    %v1198 = vrcp.pop %v1197
    %v1199 = vmul.f32 1.0, %v1198
    %v1200 = vtanh.pop %v1193
    %v1201 = vmul.f32 %v1199, %v1043
    %1203 = vrot.lane.b32.xlu0 %v1200, 64
    %v1204 = vpop.permute.xlu0 %1203
    %v1206 = vmul.f32 %v1199, %v1204
    %1208 = vrot.lane.b32.xlu0 %v1206, 32
    %v1209 = vpop.permute.xlu0 %1208
    %v1211 = vadd.f32 %v1201, %v1209
    %v1212 = vtanh.pop %v1211
    %1214 = vrot.lane.b32.xlu0 %v1212, 64
    %v1215 = vpop.permute.xlu0 %1214
    %v1217 = vmul.f32 %v1199, %v1215
    %v1218 = vpack.c.bf16 %v1217, %v1217
    %1220 = vrot.lane.b32.xlu0 %v1218, 32
    %v1221 = vpop.permute.xlu0 %1220
    %v1223 = vsel %vm115, %v1221, 0
    %1225 = vmatprep.subr.bf16.mxu0 0
    %1226 = vmatpush1.bf16.msra.mxu0 0
    %1227 = vmatprep.subr.bf16.mxu0 0
    %1228 = vmatpush1.bf16.msra.mxu0 0
    %1229 = vmatprep.subr.bf16.mxu0 0
    %1230 = vmatpush1.bf16.msra.mxu0 0
    %1231 = vmatprep.subr.bf16.mxu0 0
    %1232 = vmatpush1.bf16.msra.mxu0 0
    %1233 = vmatprep.subr.bf16.mxu0 0
    %1234 = vmatpush1.bf16.msra.mxu0 0
    %1235 = vmatprep.subr.bf16.mxu0 0
    %1236 = vmatpush1.bf16.msra.mxu0 0
    %1237 = vmatprep.subr.bf16.mxu0 0
    %1238 = vmatpush1.bf16.msra.mxu0 %v380
    %1239 = vmatprep.subr.bf16.mxu0 0
    %1240 = vmatpush1.bf16.msra.mxu0 %v379
    %1241 = vmatprep.subr.bf16.mxu0 0
    %1242 = vmatpush2.bf16.msra.mxu0 0
    %1243 = vmatprep.subr.bf16.mxu0 0
    %1244 = vmatpush2.bf16.msra.mxu0 0
    %1245 = vmatprep.subr.bf16.mxu0 0
    %1246 = vmatpush2.bf16.msra.mxu0 0
    %1247 = vmatprep.subr.bf16.mxu0 0
    %1248 = vmatpush2.bf16.msra.mxu0 0
    %1249 = vmatprep.subr.bf16.mxu0 0
    %1250 = vmatpush2.bf16.msra.mxu0 0
    %1251 = vmatprep.subr.bf16.mxu0 0
    %1252 = vmatpush2.bf16.msra.mxu0 0
    %1253 = vmatprep.subr.bf16.mxu0 0
    %1254 = vmatpush2.bf16.msra.mxu0 0
    %1255 = vmatprep.subr.bf16.mxu0 0
    %1256 = vmatpush2.bf16.msra.mxu0 0
    %1257 = vmatprep.mubr.bf16.mxu0 0
    %1258 = vmatmul.mubr.bf16.gmra.mxu0 %v1223
    %v1259 = vpop.f32.mrf.mxu0
    %v1260 = vadd.f32 %v366, %v1259
    %v1261 = vpop.f32.mrf.mxu0
    %v1262 = vpop.f32.mrf.mxu0
    %v1263 = vpop.f32.mrf.mxu0
    %1264 = vdwg.mxu0
    %vm1265 = vcmp.gt.s32.totalorder %v100, 5
    %v1266 = vsel %vm1265, 1, 0
    %v1267 = vcvt.s32.f32 %v1266
    %1269 = vset.pattern.permute.xlu0 0
    %1270 = vperm.xlu0 %1269, %v1267
    %v1271 = vpop.permute.xlu0 %1270
    %v1273 = vmul.f32 %v1260, %v1271
    %s1274 = scalar_lea.vmem [#allocation10], 20
    %1275 = vst [vmem:[%s1274] sm:$0xf] %v1273
    %s1276 = scalar_lea.vmem [#allocation2], 12
    %v1277 = vld [vmem:[%s1276] sm:$0x3]
    %1278 = vmatprep.subr.bf16.mxu0 0
    %1279 = vmatpush1.bf16.msra.mxu0 0
    %1280 = vmatprep.subr.bf16.mxu0 0
    %1281 = vmatpush1.bf16.msra.mxu0 0
    %1282 = vmatprep.subr.bf16.mxu0 0
    %1283 = vmatpush1.bf16.msra.mxu0 0
    %1284 = vmatprep.subr.bf16.mxu0 0
    %1285 = vmatpush1.bf16.msra.mxu0 0
    %1286 = vmatprep.subr.bf16.mxu0 0
    %1287 = vmatpush1.bf16.msra.mxu0 0
    %1288 = vmatprep.subr.bf16.mxu0 0
    %1289 = vmatpush1.bf16.msra.mxu0 0
    %1290 = vmatprep.subr.bf16.mxu0 0
    %1291 = vmatpush1.bf16.msra.mxu0 %v112
    %1292 = vmatprep.subr.bf16.mxu0 0
    %1293 = vmatpush1.bf16.msra.mxu0 %v111
    %1294 = vmatprep.subr.bf16.mxu0 0
    %1295 = vmatpush2.bf16.msra.mxu0 0
    %1296 = vmatprep.subr.bf16.mxu0 0
    %1297 = vmatpush2.bf16.msra.mxu0 0
    %1298 = vmatprep.subr.bf16.mxu0 0
    %1299 = vmatpush2.bf16.msra.mxu0 0
    %1300 = vmatprep.subr.bf16.mxu0 0
    %1301 = vmatpush2.bf16.msra.mxu0 0
    %1302 = vmatprep.subr.bf16.mxu0 0
    %1303 = vmatpush2.bf16.msra.mxu0 0
    %1304 = vmatprep.subr.bf16.mxu0 0
    %1305 = vmatpush2.bf16.msra.mxu0 0
    %1306 = vmatprep.subr.bf16.mxu0 0
    %1307 = vmatpush2.bf16.msra.mxu0 0
    %1308 = vmatprep.subr.bf16.mxu0 0
    %1309 = vmatpush2.bf16.msra.mxu0 0
    %1310 = vmatprep.mubr.bf16.mxu0 0
    %1311 = vmatmul.mubr.bf16.gmra.mxu0 %v1223
    %v1312 = vpop.f32.mrf.mxu0
    %v1313 = vadd.f32 0.0, %v1312
    %v1314 = vpop.f32.mrf.mxu0
    %v1315 = vpop.f32.mrf.mxu0
    %v1316 = vpop.f32.mrf.mxu0
    %1317 = vdwg.mxu0
    %v1319 = vsel %vm115, %v1277, 0
    %1321 = vmatprep.subr.bf16.mxu0 0
    %1322 = vmatpush1.bf16.msra.mxu0 0
    %1323 = vmatprep.subr.bf16.mxu0 0
    %1324 = vmatpush1.bf16.msra.mxu0 0
    %1325 = vmatprep.subr.bf16.mxu0 0
    %1326 = vmatpush1.bf16.msra.mxu0 0
    %1327 = vmatprep.subr.bf16.mxu0 0
    %1328 = vmatpush1.bf16.msra.mxu0 0
    %1329 = vmatprep.subr.bf16.mxu0 0
    %1330 = vmatpush1.bf16.msra.mxu0 0
    %1331 = vmatprep.subr.bf16.mxu0 0
    %1332 = vmatpush1.bf16.msra.mxu0 0
    %1333 = vmatprep.subr.bf16.mxu0 0
    %1334 = vmatpush1.bf16.msra.mxu0 %v168
    %1335 = vmatprep.subr.bf16.mxu0 0
    %1336 = vmatpush1.bf16.msra.mxu0 %v167
    %1337 = vmatprep.subr.bf16.mxu0 0
    %1338 = vmatpush2.bf16.msra.mxu0 0
    %1339 = vmatprep.subr.bf16.mxu0 0
    %1340 = vmatpush2.bf16.msra.mxu0 0
    %1341 = vmatprep.subr.bf16.mxu0 0
    %1342 = vmatpush2.bf16.msra.mxu0 0
    %1343 = vmatprep.subr.bf16.mxu0 0
    %1344 = vmatpush2.bf16.msra.mxu0 0
    %1345 = vmatprep.subr.bf16.mxu0 0
    %1346 = vmatpush2.bf16.msra.mxu0 0
    %1347 = vmatprep.subr.bf16.mxu0 0
    %1348 = vmatpush2.bf16.msra.mxu0 0
    %1349 = vmatprep.subr.bf16.mxu0 0
    %1350 = vmatpush2.bf16.msra.mxu0 0
    %1351 = vmatprep.subr.bf16.mxu0 0
    %1352 = vmatpush2.bf16.msra.mxu0 0
    %1353 = vmatprep.mubr.bf16.mxu0 0
    %1354 = vmatmul.mubr.bf16.gmra.mxu0 %v1319
    %v1355 = vpop.f32.mrf.mxu0
    %v1356 = vadd.f32 %v1313, %v1355
    %v1357 = vpop.f32.mrf.mxu0
    %v1358 = vpop.f32.mrf.mxu0
    %v1359 = vpop.f32.mrf.mxu0
    %1360 = vdwg.mxu0
    %v1361 = vadd.f32 %v1356, %v218
    %v1362 = vxor.u32 %v1361, 2147483648
    %v1363 = vmul.f32 %v1362, 1.442695
    %v1364 = vpow.pop %v1363
    %v1365 = vadd.f32 %v1364, 1.0
    %v1366 = vrcp.pop %v1365
    %v1367 = vmul.f32 1.0, %v1366
    %v1368 = vtanh.pop %v1361
    %v1369 = vmul.f32 %v1367, %v1211
    %1371 = vrot.lane.b32.xlu0 %v1368, 64
    %v1372 = vpop.permute.xlu0 %1371
    %v1374 = vmul.f32 %v1367, %v1372
    %1376 = vrot.lane.b32.xlu0 %v1374, 32
    %v1377 = vpop.permute.xlu0 %1376
    %v1379 = vadd.f32 %v1369, %v1377
    %v1380 = vtanh.pop %v1379
    %1382 = vrot.lane.b32.xlu0 %v1380, 64
    %v1383 = vpop.permute.xlu0 %1382
    %v1385 = vmul.f32 %v1367, %v1383
    %v1386 = vpack.c.bf16 %v1385, %v1385
    %1388 = vrot.lane.b32.xlu0 %v1386, 32
    %v1389 = vpop.permute.xlu0 %1388
    %v1391 = vsel %vm115, %v1389, 0
    %1393 = vmatprep.subr.bf16.mxu0 0
    %1394 = vmatpush1.bf16.msra.mxu0 0
    %1395 = vmatprep.subr.bf16.mxu0 0
    %1396 = vmatpush1.bf16.msra.mxu0 0
    %1397 = vmatprep.subr.bf16.mxu0 0
    %1398 = vmatpush1.bf16.msra.mxu0 0
    %1399 = vmatprep.subr.bf16.mxu0 0
    %1400 = vmatpush1.bf16.msra.mxu0 0
    %1401 = vmatprep.subr.bf16.mxu0 0
    %1402 = vmatpush1.bf16.msra.mxu0 0
    %1403 = vmatprep.subr.bf16.mxu0 0
    %1404 = vmatpush1.bf16.msra.mxu0 0
    %1405 = vmatprep.subr.bf16.mxu0 0
    %1406 = vmatpush1.bf16.msra.mxu0 %v380
    %1407 = vmatprep.subr.bf16.mxu0 0
    %1408 = vmatpush1.bf16.msra.mxu0 %v379
    %1409 = vmatprep.subr.bf16.mxu0 0
    %1410 = vmatpush2.bf16.msra.mxu0 0
    %1411 = vmatprep.subr.bf16.mxu0 0
    %1412 = vmatpush2.bf16.msra.mxu0 0
    %1413 = vmatprep.subr.bf16.mxu0 0
    %1414 = vmatpush2.bf16.msra.mxu0 0
    %1415 = vmatprep.subr.bf16.mxu0 0
    %1416 = vmatpush2.bf16.msra.mxu0 0
    %1417 = vmatprep.subr.bf16.mxu0 0
    %1418 = vmatpush2.bf16.msra.mxu0 0
    %1419 = vmatprep.subr.bf16.mxu0 0
    %1420 = vmatpush2.bf16.msra.mxu0 0
    %1421 = vmatprep.subr.bf16.mxu0 0
    %1422 = vmatpush2.bf16.msra.mxu0 0
    %1423 = vmatprep.subr.bf16.mxu0 0
    %1424 = vmatpush2.bf16.msra.mxu0 0
    %1425 = vmatprep.mubr.bf16.mxu0 0
    %1426 = vmatmul.mubr.bf16.gmra.mxu0 %v1391
    %v1427 = vpop.f32.mrf.mxu0
    %v1428 = vadd.f32 %v366, %v1427
    %v1429 = vpop.f32.mrf.mxu0
    %v1430 = vpop.f32.mrf.mxu0
    %v1431 = vpop.f32.mrf.mxu0
    %1432 = vdwg.mxu0
    %vm1433 = vcmp.gt.s32.totalorder %v100, 6
    %v1434 = vsel %vm1433, 1, 0
    %v1435 = vcvt.s32.f32 %v1434
    %1437 = vset.pattern.permute.xlu0 0
    %1438 = vperm.xlu0 %1437, %v1435
    %v1439 = vpop.permute.xlu0 %1438
    %v1441 = vmul.f32 %v1428, %v1439
    %s1442 = scalar_lea.vmem [#allocation10], 24
    %1443 = vst [vmem:[%s1442] sm:$0xf] %v1441
    // Predicated region
    $region50: #{tpu_custom_call.1} parent=1 // pred_check
      _
    $region51: #{tpu_custom_call.1} parent=1 // pred_check_branch
      %1445 = sbr.rel (0) target = $region53
    $region52: #{tpu_custom_call.1} parent=1 // pred_region
      %s1447 = ssub.s32 448, 448
      %1448 = vsyncadd [#allocation4], %s1447
      %s1449 = sshll.u32 [#allocation10], 4
      %s1450 = int_to_ptr.vmem [resolvable:$true] %s1449
      %1455 = dma.vmem_to_hbm [thread:$0]  %s1450, 448, %s8, [#allocation4], 64, 64, 4
    $region53: #{tpu_custom_call.1} parent=1 // pred_fallthru
      _
    // Predicated region
    $region54: #{tpu_custom_call.1} parent=1 // pred_check
      _
    $region55: #{tpu_custom_call.1} parent=1 // pred_check_branch
      %1457 = sbr.rel (0) target = $region57
    $region56: #{tpu_custom_call.1} parent=1 // pred_region
      %1458 = dma.done [#allocation4], 448
    $region57: #{tpu_custom_call.1} parent=1 // pred_fallthru
      _
    %1459 = vsyncpa [#allocation3], 1
    %1460 = vsyncpa [#allocation6], 1
    %1461 = vsyncpa [#allocation9], 1
    %1462 = vsyncpa [#allocation4], 1

</llo_original>
